<compile_context>
chip_gen: v6e
topology: v6e:2x2x1
jax: 0.10.0
libtpu: 0.0.40
codegen_flags: <defaults>
</compile_context>

<pallas_src>
import jax
import jax.numpy as jnp
from jax.experimental import pallas as pl
from jax.experimental.pallas import tpu as pltpu

# ---------------- model hyper-parameters (small, consistent with module) ----
IN_CHANNELS = 16
HIDDEN = 32
HEADS = 4
HEAD_DIM = HIDDEN // HEADS          # 8
OUT_CHANNELS = 2
N_AUTHOR = 8
N_PAPER = 8
N_SRC = 8                           # both edge types have 8 source nodes
HN = HEADS * N_SRC                  # 32 lane-packed per-head width
LABEL = "paper"
NEG_INF = -1e30

VMEM_SPEC = pl.BlockSpec(memory_space=pltpu.MemorySpace.VMEM)

# ------------- packed parameter-slab layout (all bands 8-row aligned) --------
_BANDS = [
    ("w_author", HIDDEN), ("w_paper", HIDDEN),     # (32,32) proj weights, rows 16:32 zero
    ("b_author", 8), ("b_paper", 8),               # proj biases pre-broadcast to 8 rows
    ("att_dst_w", HIDDEN), ("att_src_w", HIDDEN),  # R-folded attention weights (32, H*Ns)
    ("att_dst_c", HIDDEN), ("att_src_c", HIDDEN),
    ("diag", 8),                                   # diag[j, h*ns+j'] = (j == j')
    ("ind", HN),                                   # ind[h*ns+j, h'*D+d] = (h == h')
    ("rep", HN),                                   # rep[h*ns+j, j'] = (j == j'), cols ns:32 zero
    ("k_w", HIDDEN), ("k_b", 8), ("q", 8),         # semantic attention (q in row 0 of its band)
    ("lin_w", HIDDEN), ("lin_b", 8),               # final linear, cols OUT:32 zero
]
_OFFS = {}
_r = 0
for _name, _rows in _BANDS:
    _OFFS[_name] = (_r, _r + _rows)
    _r += _rows
PARAM_ROWS = _r                                    # 368

# data-slab row offsets
_D_XA, _D_XP, _D_BW, _D_BC = 0, 8, 16, 24
DATA_ROWS = 32


# ----------------------------- fused Pallas kernel ---------------------------
def _han_fused_kernel(p_ref, d_ref, o_ref):
    def band(name):
        a, b = _OFFS[name]
        return p_ref[a:b, :]

    # ---- data (packed in the wrapper: zero-padded features, head-tiled biases)
    xa_in = d_ref[_D_XA:_D_XA + N_AUTHOR, :]          # (8, 32), cols 16:32 zero
    xp_in = d_ref[_D_XP:_D_XP + N_PAPER, :]           # (8, 32)
    bias_w = d_ref[_D_BW:_D_BW + N_PAPER, :]          # (8, 32) additive mask, head-replicated
    bias_c = d_ref[_D_BC:_D_BC + N_PAPER, :]          # (8, 32)

    # ---- 1. per-node-type projections (padded rows of W are zero => exact)
    xa = jnp.dot(xa_in, band("w_author"),
                 preferred_element_type=jnp.float32) + band("b_author")
    xp = jnp.dot(xp_in, band("w_paper"),
                 preferred_element_type=jnp.float32) + band("b_paper")

    # ---- constant structure, precomputed at init (no iota/compare in kernel)
    diag = band("diag")                                # (Ns, H*Ns)
    ind = band("ind")                                  # (H*Ns, HIDDEN)
    ra, rb = _OFFS["rep"]
    rep = p_ref[ra:rb, 0:N_SRC]                        # (H*Ns, Ns) replicator
    ones_row = jnp.ones((1, N_SRC), jnp.float32)

    def edge_attention(x_src, x_dst, att_dst_exp, att_src_exp, bias_rep):
        # per-head logits, fully lane-dense in a (Nd, H*Ns) slab
        d_part = jnp.dot(x_dst, att_dst_exp, preferred_element_type=jnp.float32)
        w_full = jnp.dot(x_src, att_src_exp, preferred_element_type=jnp.float32)
        # diagonal pick on the MXU: s_row[0, h*ns+j] = alpha_src[j, h]
        s_row = jnp.dot(ones_row, w_full * diag, preferred_element_type=jnp.float32)
        logits = d_part + s_row
        logits = jnp.maximum(logits, 0.2 * logits)     # leaky_relu(0.2)
        masked = logits + bias_rep
        # Numerically-stable *unnormalized* softmax weights.  The shift only has
        # to be constant in j for each (i, h); the shared row max is such a shift.
        # TODO(synk): shift is the row max over ALL heads; switch to a per-head
        #             max if trained weights make heads differ by >~80 in logits.
        m = jnp.maximum(jnp.max(masked, axis=-1, keepdims=True), -1e20)
        w = jnp.exp(masked - m)                        # (Nd, H*Ns)
        # block-diagonal aggregation: replicate x_src on the MXU, mask, contract
        x_rep = jnp.dot(rep, x_src, preferred_element_type=jnp.float32)   # (H*Ns, HIDDEN)
        blk = x_rep * ind
        out_raw = jnp.dot(w, blk, preferred_element_type=jnp.float32)     # (Nd, HIDDEN)
        denom = jnp.dot(w, ind, preferred_element_type=jnp.float32)       # per-head softmax denom
        inv = pl.reciprocal(jnp.maximum(denom, 1e-20), approx=True)       # EUP slot
        return jnp.maximum(out_raw * inv, 0.0)                            # F.relu

    # ---- 2. per-edge-type attention + aggregation (both end at "paper")
    out_w = edge_attention(xa, xp, band("att_dst_w"), band("att_src_w"), bias_w)
    out_c = edge_attention(xp, xp, band("att_dst_c"), band("att_src_c"), bias_c)

    # ---- 3. semantic ("group") attention across the two edge types
    k_w = band("k_w")
    k_b = band("k_b")
    qa, _ = _OFFS["q"]
    q = p_ref[qa:qa + 1, :]                            # (1, HIDDEN)
    k0 = jnp.tanh(jnp.dot(out_w, k_w, preferred_element_type=jnp.float32) + k_b)
    k1 = jnp.tanh(jnp.dot(out_c, k_w, preferred_element_type=jnp.float32) + k_b)
    s0 = jnp.sum(q * jnp.mean(k0, axis=0, keepdims=True), axis=-1, keepdims=True)
    s1 = jnp.sum(q * jnp.mean(k1, axis=0, keepdims=True), axis=-1, keepdims=True)
    m = jnp.maximum(s0, s1)
    e0 = jnp.exp(s0 - m)
    e1 = jnp.exp(s1 - m)
    inv = pl.reciprocal(e0 + e1, approx=True)
    x_label = (e0 * inv) * out_w + (e1 * inv) * out_c  # (Np, HIDDEN)

    # ---- 4. final linear head (weight zero-padded to 32 lanes in the slab)
    full = jnp.dot(x_label, band("lin_w"),
                   preferred_element_type=jnp.float32) + band("lin_b")
    o_ref[...] = full[:, 0:OUT_CHANNELS]


# ----------------------------- wrapper ---------------------------------------
@jax.jit
def han_forward(x_author, x_paper, bias_writes, bias_cites, param_slab):
    """Whole HAN forward as a single pallas_call (2 packed VMEM inputs)."""
    # data-slab packing is wrapper-side layout plumbing (one small DMA instead of 4)
    xa = jnp.pad(x_author, ((0, 0), (0, HIDDEN - IN_CHANNELS)))
    xp = jnp.pad(x_paper, ((0, 0), (0, HIDDEN - IN_CHANNELS)))
    bw = jnp.tile(bias_writes, (1, HEADS))             # head-replicated additive mask
    bc = jnp.tile(bias_cites, (1, HEADS))
    data_slab = jnp.concatenate([xa, xp, bw, bc], axis=0).astype(jnp.float32)
    return pl.pallas_call(
        _han_fused_kernel,
        out_shape=jax.ShapeDtypeStruct((N_PAPER, OUT_CHANNELS), jnp.float32),
        in_specs=[VMEM_SPEC, VMEM_SPEC],
        out_specs=VMEM_SPEC,
    )(param_slab, data_slab)


# ----------------------------- parameter init --------------------------------
def _expand_att(att_hd):
    """(HEADS, HEAD_DIM) attention vector -> (HIDDEN, HEADS*N_SRC), with the
    head-expansion matrix R folded in:
      A[c, h*ns + j] = att_hd[h, c - h*HEAD_DIM] if c // HEAD_DIM == h else 0,
    so x_proj @ A directly gives the per-head score replicated per source slot."""
    flat = att_hd.reshape(HIDDEN)                      # channel order h*D + d
    head_of_c = jnp.arange(HIDDEN) // HEAD_DIM
    head_of_col = jnp.arange(HN) // N_SRC
    return jnp.where(head_of_c[:, None] == head_of_col[None, :],
                     flat[:, None], 0.0).astype(jnp.float32)


def init_params(key):
    """Build all HAN parameters and pack them into one (PARAM_ROWS, 32) slab."""
    ks = iter(jax.random.split(key, 16))

    def mat(k, fi, fo):
        return 0.1 * jax.random.normal(k, (fi, fo), jnp.float32)

    def vec(k, n):
        return 0.1 * jax.random.normal(k, (n,), jnp.float32)

    w_author, b_author = mat(next(ks), IN_CHANNELS, HIDDEN), vec(next(ks), HIDDEN)
    w_paper, b_paper = mat(next(ks), IN_CHANNELS, HIDDEN), vec(next(ks), HIDDEN)
    att_src_w = 0.1 * jax.random.normal(next(ks), (HEADS, HEAD_DIM), jnp.float32)
    att_dst_w = 0.1 * jax.random.normal(next(ks), (HEADS, HEAD_DIM), jnp.float32)
    att_src_c = 0.1 * jax.random.normal(next(ks), (HEADS, HEAD_DIM), jnp.float32)
    att_dst_c = 0.1 * jax.random.normal(next(ks), (HEADS, HEAD_DIM), jnp.float32)
    q = vec(next(ks), HIDDEN)
    k_w = mat(next(ks), HIDDEN, HIDDEN)
    k_b = vec(next(ks), HIDDEN)
    lin_w = mat(next(ks), HIDDEN, OUT_CHANNELS)
    lin_b = vec(next(ks), OUT_CHANNELS)

    # constant structure baked into the slab
    cols = jnp.arange(HN)
    diag = (cols[None, :] % N_SRC == jnp.arange(N_SRC)[:, None]).astype(jnp.float32)
    ind = (cols[:, None] // N_SRC ==
           (jnp.arange(HIDDEN)[None, :] // HEAD_DIM)).astype(jnp.float32)
    rep = (cols[:, None] % N_SRC == jnp.arange(N_SRC)[None, :]).astype(jnp.float32)

    def b8(v):
        # length-n vector -> (8, HIDDEN) band, zero-padded lanes, pre-broadcast rows
        row = jnp.zeros((HIDDEN,), jnp.float32).at[: v.shape[0]].set(v)
        return jnp.broadcast_to(row[None, :], (8, HIDDEN))

    bands = {
        "w_author": jnp.pad(w_author, ((0, HIDDEN - IN_CHANNELS), (0, 0))),
        "w_paper": jnp.pad(w_paper, ((0, HIDDEN - IN_CHANNELS), (0, 0))),
        "b_author": b8(b_author),
        "b_paper": b8(b_paper),
        "att_dst_w": _expand_att(att_dst_w),
        "att_src_w": _expand_att(att_src_w),
        "att_dst_c": _expand_att(att_dst_c),
        "att_src_c": _expand_att(att_src_c),
        "diag": diag,
        "ind": ind,
        "rep": jnp.pad(rep, ((0, 0), (0, HIDDEN - N_SRC))),
        "k_w": k_w,
        "k_b": b8(k_b),
        "q": jnp.pad(q[None, :], ((0, 7), (0, 0))),
        "lin_w": jnp.pad(lin_w, ((0, 0), (0, HIDDEN - OUT_CHANNELS))),
        "lin_b": b8(lin_b),
    }
    slab = jnp.concatenate([bands[name] for name, _ in _BANDS], axis=0)
    assert slab.shape == (PARAM_ROWS, HIDDEN), slab.shape
    return slab


# --------------------------------- main ---------------------------------------
if __name__ == "__main__":
    root = jax.random.PRNGKey(0)
    k_par, k_xa, k_xp, k_m1, k_m2 = jax.random.split(root, 5)

    param_slab = init_params(k_par)

    x_author = jax.random.normal(k_xa, (N_AUTHOR, IN_CHANNELS), jnp.float32)
    x_paper = jax.random.normal(k_xp, (N_PAPER, IN_CHANNELS), jnp.float32)

    # dense adjacency standing in for edge_index_dict, expressed as ADDITIVE
    # biases (0 = edge present, -1e30 = absent) so the kernel needs no selects.
    adj_writes = jax.random.bernoulli(k_m1, 0.5, (N_PAPER, N_AUTHOR))
    adj_cites = jax.random.bernoulli(k_m2, 0.5, (N_PAPER, N_PAPER))
    bias_writes = jnp.where(adj_writes, 0.0, NEG_INF).astype(jnp.float32)
    bias_cites = jnp.where(adj_cites, 0.0, NEG_INF).astype(jnp.float32)

    out = han_forward(x_author, x_paper, bias_writes, bias_cites, param_slab)
    out = jax.block_until_ready(out)

    assert out.shape == (N_PAPER, OUT_CHANNELS), out.shape
    assert bool(jnp.all(jnp.isfinite(out)))
    print("KERNEL_OK")
</pallas_src>

<mosaic_0001>
module attributes {stable_mosaic.version = 11 : i64} {
  func.func @_han_fused_kernel(%arg0: memref<368x32xf32, #tpu.memory_space<vmem>>, %arg1: memref<32x32xf32, #tpu.memory_space<vmem>>, %arg2: memref<8x2xf32, #tpu.memory_space<vmem>>) attributes {dimension_semantics = [], scalar_prefetch = 0 : i64, scratch_operands = 0 : i64, tpu.core_type = #tpu.core_type<tc>} {
    %c0 = arith.constant 0 : index
    %c0_0 = arith.constant 0 : index
    %0 = vector.load %arg1[%c0, %c0_0] : memref<32x32xf32, #tpu.memory_space<vmem>>, vector<8x32xf32>
    %c8 = arith.constant 8 : index
    %c0_1 = arith.constant 0 : index
    %1 = vector.load %arg1[%c8, %c0_1] : memref<32x32xf32, #tpu.memory_space<vmem>>, vector<8x32xf32>
    %c16 = arith.constant 16 : index
    %c0_2 = arith.constant 0 : index
    %2 = vector.load %arg1[%c16, %c0_2] : memref<32x32xf32, #tpu.memory_space<vmem>>, vector<8x32xf32>
    %c24 = arith.constant 24 : index
    %c0_3 = arith.constant 0 : index
    %3 = vector.load %arg1[%c24, %c0_3] : memref<32x32xf32, #tpu.memory_space<vmem>>, vector<8x32xf32>
    %c0_4 = arith.constant 0 : index
    %c0_5 = arith.constant 0 : index
    %4 = vector.load %arg0[%c0_4, %c0_5] : memref<368x32xf32, #tpu.memory_space<vmem>>, vector<32x32xf32>
    %cst = arith.constant dense<0.000000e+00> : vector<8x32xf32>
    %5 = tpu.matmul %0, %4, %cst {dimension_numbers = #tpu.dot_dimension_numbers<[1], [0], [0], [1], [0, 0, 1, 1], [], []>} : vector<8x32xf32>, vector<32x32xf32>, vector<8x32xf32> -> vector<8x32xf32>
    %c64 = arith.constant 64 : index
    %c0_6 = arith.constant 0 : index
    %6 = vector.load %arg0[%c64, %c0_6] : memref<368x32xf32, #tpu.memory_space<vmem>>, vector<8x32xf32>
    %7 = arith.addf %5, %6 : vector<8x32xf32>
    %c32 = arith.constant 32 : index
    %c0_7 = arith.constant 0 : index
    %8 = vector.load %arg0[%c32, %c0_7] : memref<368x32xf32, #tpu.memory_space<vmem>>, vector<32x32xf32>
    %cst_8 = arith.constant dense<0.000000e+00> : vector<8x32xf32>
    %9 = tpu.matmul %1, %8, %cst_8 {dimension_numbers = #tpu.dot_dimension_numbers<[1], [0], [0], [1], [0, 0, 1, 1], [], []>} : vector<8x32xf32>, vector<32x32xf32>, vector<8x32xf32> -> vector<8x32xf32>
    %c72 = arith.constant 72 : index
    %c0_9 = arith.constant 0 : index
    %10 = vector.load %arg0[%c72, %c0_9] : memref<368x32xf32, #tpu.memory_space<vmem>>, vector<8x32xf32>
    %11 = arith.addf %9, %10 : vector<8x32xf32>
    %c208 = arith.constant 208 : index
    %c0_10 = arith.constant 0 : index
    %12 = vector.load %arg0[%c208, %c0_10] : memref<368x32xf32, #tpu.memory_space<vmem>>, vector<8x32xf32>
    %c216 = arith.constant 216 : index
    %c0_11 = arith.constant 0 : index
    %13 = vector.load %arg0[%c216, %c0_11] : memref<368x32xf32, #tpu.memory_space<vmem>>, vector<32x32xf32>
    %c248 = arith.constant 248 : index
    %c0_12 = arith.constant 0 : index
    %14 = vector.load %arg0[%c248, %c0_12] : memref<368x32xf32, #tpu.memory_space<vmem>>, vector<32x8xf32>
    %cst_13 = arith.constant 1.000000e+00 : f32
    %15 = vector.broadcast %cst_13 : f32 to vector<1x8xf32>
    %c80 = arith.constant 80 : index
    %c0_14 = arith.constant 0 : index
    %16 = vector.load %arg0[%c80, %c0_14] : memref<368x32xf32, #tpu.memory_space<vmem>>, vector<32x32xf32>
    %c112 = arith.constant 112 : index
    %c0_15 = arith.constant 0 : index
    %17 = vector.load %arg0[%c112, %c0_15] : memref<368x32xf32, #tpu.memory_space<vmem>>, vector<32x32xf32>
    %cst_16 = arith.constant dense<0.000000e+00> : vector<8x32xf32>
    %18 = tpu.matmul %11, %16, %cst_16 {dimension_numbers = #tpu.dot_dimension_numbers<[1], [0], [0], [1], [0, 0, 1, 1], [], []>} : vector<8x32xf32>, vector<32x32xf32>, vector<8x32xf32> -> vector<8x32xf32>
    %cst_17 = arith.constant dense<0.000000e+00> : vector<8x32xf32>
    %19 = tpu.matmul %7, %17, %cst_17 {dimension_numbers = #tpu.dot_dimension_numbers<[1], [0], [0], [1], [0, 0, 1, 1], [], []>} : vector<8x32xf32>, vector<32x32xf32>, vector<8x32xf32> -> vector<8x32xf32>
    %20 = arith.mulf %19, %12 : vector<8x32xf32>
    %cst_18 = arith.constant dense<0.000000e+00> : vector<1x32xf32>
    %21 = tpu.matmul %15, %20, %cst_18 {dimension_numbers = #tpu.dot_dimension_numbers<[1], [0], [0], [1], [0, 0, 1, 1], [], []>} : vector<1x8xf32>, vector<8x32xf32>, vector<1x32xf32> -> vector<1x32xf32>
    %22 = vector.broadcast %21 : vector<1x32xf32> to vector<8x32xf32>
    %23 = arith.addf %18, %22 : vector<8x32xf32>
    %cst_19 = arith.constant 2.000000e-01 : f32
    %24 = vector.broadcast %cst_19 : f32 to vector<8x32xf32>
    %25 = arith.mulf %24, %23 : vector<8x32xf32>
    %26 = arith.maximumf %23, %25 : vector<8x32xf32>
    %27 = arith.addf %26, %2 : vector<8x32xf32>
    %cst_20 = arith.constant dense<0xFF800000> : vector<8xf32>
    %28 = vector.multi_reduction <maximumf>, %27, %cst_20 [1] : vector<8x32xf32> to vector<8xf32>
    %29 = vector.shape_cast %28 : vector<8xf32> to vector<8x1xf32>
    %cst_21 = arith.constant -1.000000e+20 : f32
    %30 = vector.broadcast %cst_21 : f32 to vector<8x1xf32>
    %31 = arith.maximumf %29, %30 : vector<8x1xf32>
    %32 = vector.broadcast %31 : vector<8x1xf32> to vector<8x32xf32>
    %33 = arith.subf %27, %32 : vector<8x32xf32>
    %34 = math.exp %33 : vector<8x32xf32>
    %cst_22 = arith.constant dense<0.000000e+00> : vector<32x32xf32>
    %35 = tpu.matmul %14, %7, %cst_22 {dimension_numbers = #tpu.dot_dimension_numbers<[1], [0], [0], [1], [0, 0, 1, 1], [], []>} : vector<32x8xf32>, vector<8x32xf32>, vector<32x32xf32> -> vector<32x32xf32>
    %36 = arith.mulf %35, %13 : vector<32x32xf32>
    %cst_23 = arith.constant dense<0.000000e+00> : vector<8x32xf32>
    %37 = tpu.matmul %34, %36, %cst_23 {dimension_numbers = #tpu.dot_dimension_numbers<[1], [0], [0], [1], [0, 0, 1, 1], [], []>} : vector<8x32xf32>, vector<32x32xf32>, vector<8x32xf32> -> vector<8x32xf32>
    %cst_24 = arith.constant dense<0.000000e+00> : vector<8x32xf32>
    %38 = tpu.matmul %34, %13, %cst_24 {dimension_numbers = #tpu.dot_dimension_numbers<[1], [0], [0], [1], [0, 0, 1, 1], [], []>} : vector<8x32xf32>, vector<32x32xf32>, vector<8x32xf32> -> vector<8x32xf32>
    %cst_25 = arith.constant 9.99999968E-21 : f32
    %39 = vector.broadcast %cst_25 : f32 to vector<8x32xf32>
    %40 = arith.maximumf %38, %39 : vector<8x32xf32>
    %41 = tpu.reciprocal %40 {approx = true} : vector<8x32xf32> -> vector<8x32xf32>
    %42 = arith.mulf %37, %41 : vector<8x32xf32>
    %cst_26 = arith.constant 0.000000e+00 : f32
    %43 = vector.broadcast %cst_26 : f32 to vector<8x32xf32>
    %44 = arith.maximumf %42, %43 : vector<8x32xf32>
    %c144 = arith.constant 144 : index
    %c0_27 = arith.constant 0 : index
    %45 = vector.load %arg0[%c144, %c0_27] : memref<368x32xf32, #tpu.memory_space<vmem>>, vector<32x32xf32>
    %c176 = arith.constant 176 : index
    %c0_28 = arith.constant 0 : index
    %46 = vector.load %arg0[%c176, %c0_28] : memref<368x32xf32, #tpu.memory_space<vmem>>, vector<32x32xf32>
    %cst_29 = arith.constant dense<0.000000e+00> : vector<8x32xf32>
    %47 = tpu.matmul %11, %45, %cst_29 {dimension_numbers = #tpu.dot_dimension_numbers<[1], [0], [0], [1], [0, 0, 1, 1], [], []>} : vector<8x32xf32>, vector<32x32xf32>, vector<8x32xf32> -> vector<8x32xf32>
    %cst_30 = arith.constant dense<0.000000e+00> : vector<8x32xf32>
    %48 = tpu.matmul %11, %46, %cst_30 {dimension_numbers = #tpu.dot_dimension_numbers<[1], [0], [0], [1], [0, 0, 1, 1], [], []>} : vector<8x32xf32>, vector<32x32xf32>, vector<8x32xf32> -> vector<8x32xf32>
    %49 = arith.mulf %48, %12 : vector<8x32xf32>
    %cst_31 = arith.constant dense<0.000000e+00> : vector<1x32xf32>
    %50 = tpu.matmul %15, %49, %cst_31 {dimension_numbers = #tpu.dot_dimension_numbers<[1], [0], [0], [1], [0, 0, 1, 1], [], []>} : vector<1x8xf32>, vector<8x32xf32>, vector<1x32xf32> -> vector<1x32xf32>
    %51 = vector.broadcast %50 : vector<1x32xf32> to vector<8x32xf32>
    %52 = arith.addf %47, %51 : vector<8x32xf32>
    %cst_32 = arith.constant 2.000000e-01 : f32
    %53 = vector.broadcast %cst_32 : f32 to vector<8x32xf32>
    %54 = arith.mulf %53, %52 : vector<8x32xf32>
    %55 = arith.maximumf %52, %54 : vector<8x32xf32>
    %56 = arith.addf %55, %3 : vector<8x32xf32>
    %cst_33 = arith.constant dense<0xFF800000> : vector<8xf32>
    %57 = vector.multi_reduction <maximumf>, %56, %cst_33 [1] : vector<8x32xf32> to vector<8xf32>
    %58 = vector.shape_cast %57 : vector<8xf32> to vector<8x1xf32>
    %cst_34 = arith.constant -1.000000e+20 : f32
    %59 = vector.broadcast %cst_34 : f32 to vector<8x1xf32>
    %60 = arith.maximumf %58, %59 : vector<8x1xf32>
    %61 = vector.broadcast %60 : vector<8x1xf32> to vector<8x32xf32>
    %62 = arith.subf %56, %61 : vector<8x32xf32>
    %63 = math.exp %62 : vector<8x32xf32>
    %cst_35 = arith.constant dense<0.000000e+00> : vector<32x32xf32>
    %64 = tpu.matmul %14, %11, %cst_35 {dimension_numbers = #tpu.dot_dimension_numbers<[1], [0], [0], [1], [0, 0, 1, 1], [], []>} : vector<32x8xf32>, vector<8x32xf32>, vector<32x32xf32> -> vector<32x32xf32>
    %65 = arith.mulf %64, %13 : vector<32x32xf32>
    %cst_36 = arith.constant dense<0.000000e+00> : vector<8x32xf32>
    %66 = tpu.matmul %63, %65, %cst_36 {dimension_numbers = #tpu.dot_dimension_numbers<[1], [0], [0], [1], [0, 0, 1, 1], [], []>} : vector<8x32xf32>, vector<32x32xf32>, vector<8x32xf32> -> vector<8x32xf32>
    %cst_37 = arith.constant dense<0.000000e+00> : vector<8x32xf32>
    %67 = tpu.matmul %63, %13, %cst_37 {dimension_numbers = #tpu.dot_dimension_numbers<[1], [0], [0], [1], [0, 0, 1, 1], [], []>} : vector<8x32xf32>, vector<32x32xf32>, vector<8x32xf32> -> vector<8x32xf32>
    %cst_38 = arith.constant 9.99999968E-21 : f32
    %68 = vector.broadcast %cst_38 : f32 to vector<8x32xf32>
    %69 = arith.maximumf %67, %68 : vector<8x32xf32>
    %70 = tpu.reciprocal %69 {approx = true} : vector<8x32xf32> -> vector<8x32xf32>
    %71 = arith.mulf %66, %70 : vector<8x32xf32>
    %cst_39 = arith.constant 0.000000e+00 : f32
    %72 = vector.broadcast %cst_39 : f32 to vector<8x32xf32>
    %73 = arith.maximumf %71, %72 : vector<8x32xf32>
    %c280 = arith.constant 280 : index
    %c0_40 = arith.constant 0 : index
    %74 = vector.load %arg0[%c280, %c0_40] : memref<368x32xf32, #tpu.memory_space<vmem>>, vector<32x32xf32>
    %c312 = arith.constant 312 : index
    %c0_41 = arith.constant 0 : index
    %75 = vector.load %arg0[%c312, %c0_41] : memref<368x32xf32, #tpu.memory_space<vmem>>, vector<8x32xf32>
    %c320 = arith.constant 320 : index
    %c0_42 = arith.constant 0 : index
    %76 = vector.load %arg0[%c320, %c0_42] : memref<368x32xf32, #tpu.memory_space<vmem>>, vector<1x32xf32>
    %cst_43 = arith.constant dense<0.000000e+00> : vector<8x32xf32>
    %77 = tpu.matmul %44, %74, %cst_43 {dimension_numbers = #tpu.dot_dimension_numbers<[1], [0], [0], [1], [0, 0, 1, 1], [], []>} : vector<8x32xf32>, vector<32x32xf32>, vector<8x32xf32> -> vector<8x32xf32>
    %78 = arith.addf %77, %75 : vector<8x32xf32>
    %79 = math.tanh %78 : vector<8x32xf32>
    %cst_44 = arith.constant dense<0.000000e+00> : vector<8x32xf32>
    %80 = tpu.matmul %73, %74, %cst_44 {dimension_numbers = #tpu.dot_dimension_numbers<[1], [0], [0], [1], [0, 0, 1, 1], [], []>} : vector<8x32xf32>, vector<32x32xf32>, vector<8x32xf32> -> vector<8x32xf32>
    %81 = arith.addf %80, %75 : vector<8x32xf32>
    %82 = math.tanh %81 : vector<8x32xf32>
    %cst_45 = arith.constant dense<0.000000e+00> : vector<32xf32>
    %83 = vector.multi_reduction <add>, %79, %cst_45 [0] : vector<8x32xf32> to vector<32xf32>
    %84 = vector.shape_cast %83 : vector<32xf32> to vector<1x32xf32>
    %cst_46 = arith.constant 8.000000e+00 : f32
    %85 = vector.broadcast %cst_46 : f32 to vector<1x32xf32>
    %86 = arith.divf %84, %85 : vector<1x32xf32>
    %87 = arith.mulf %76, %86 : vector<1x32xf32>
    %cst_47 = arith.constant dense<0.000000e+00> : vector<1xf32>
    %88 = vector.multi_reduction <add>, %87, %cst_47 [1] : vector<1x32xf32> to vector<1xf32>
    %89 = vector.shape_cast %88 : vector<1xf32> to vector<1x1xf32>
    %cst_48 = arith.constant dense<0.000000e+00> : vector<32xf32>
    %90 = vector.multi_reduction <add>, %82, %cst_48 [0] : vector<8x32xf32> to vector<32xf32>
    %91 = vector.shape_cast %90 : vector<32xf32> to vector<1x32xf32>
    %cst_49 = arith.constant 8.000000e+00 : f32
    %92 = vector.broadcast %cst_49 : f32 to vector<1x32xf32>
    %93 = arith.divf %91, %92 : vector<1x32xf32>
    %94 = arith.mulf %76, %93 : vector<1x32xf32>
    %cst_50 = arith.constant dense<0.000000e+00> : vector<1xf32>
    %95 = vector.multi_reduction <add>, %94, %cst_50 [1] : vector<1x32xf32> to vector<1xf32>
    %96 = vector.shape_cast %95 : vector<1xf32> to vector<1x1xf32>
    %97 = arith.maximumf %89, %96 : vector<1x1xf32>
    %98 = arith.subf %89, %97 : vector<1x1xf32>
    %99 = math.exp %98 : vector<1x1xf32>
    %100 = arith.subf %96, %97 : vector<1x1xf32>
    %101 = math.exp %100 : vector<1x1xf32>
    %102 = arith.addf %99, %101 : vector<1x1xf32>
    %103 = tpu.reciprocal %102 {approx = true} : vector<1x1xf32> -> vector<1x1xf32>
    %104 = arith.mulf %99, %103 : vector<1x1xf32>
    %105 = vector.broadcast %104 : vector<1x1xf32> to vector<8x32xf32>
    %106 = arith.mulf %105, %44 : vector<8x32xf32>
    %107 = arith.mulf %101, %103 : vector<1x1xf32>
    %108 = vector.broadcast %107 : vector<1x1xf32> to vector<8x32xf32>
    %109 = arith.mulf %108, %73 : vector<8x32xf32>
    %110 = arith.addf %106, %109 : vector<8x32xf32>
    %c328 = arith.constant 328 : index
    %c0_51 = arith.constant 0 : index
    %111 = vector.load %arg0[%c328, %c0_51] : memref<368x32xf32, #tpu.memory_space<vmem>>, vector<32x32xf32>
    %cst_52 = arith.constant dense<0.000000e+00> : vector<8x32xf32>
    %112 = tpu.matmul %110, %111, %cst_52 {dimension_numbers = #tpu.dot_dimension_numbers<[1], [0], [0], [1], [0, 0, 1, 1], [], []>} : vector<8x32xf32>, vector<32x32xf32>, vector<8x32xf32> -> vector<8x32xf32>
    %c360 = arith.constant 360 : index
    %c0_53 = arith.constant 0 : index
    %113 = vector.load %arg0[%c360, %c0_53] : memref<368x32xf32, #tpu.memory_space<vmem>>, vector<8x32xf32>
    %114 = arith.addf %112, %113 : vector<8x32xf32>
    %115 = vector.extract_strided_slice %114 {offsets = [0, 0], sizes = [8, 2], strides = [1, 1]} : vector<8x32xf32> to vector<8x2xf32>
    %c0_54 = arith.constant 0 : index
    %c0_55 = arith.constant 0 : index
    %116 = vector.load %arg2[%c0_54, %c0_55] : memref<8x2xf32, #tpu.memory_space<vmem>>, vector<8x2xf32>
    tpu.vector_store %arg2[%c0_54, %c0_55], %115 {strides = array<i32>} : memref<8x2xf32, #tpu.memory_space<vmem>>, vector<8x2xf32>,
    return
  }
}

</mosaic_0001>

<llo_original>
// kernel: tile.14
$region0: #{tile.14}
  %s0 = inlined_call_operand.vmem [shape: f32[8,4,8], index: 0, kind: input, shape index: {}]
  %s1 = inlined_call_operand.vmem [shape: f32[8,32], index: 1, kind: output, shape index: {}]
  $region1: #{tile.14} parent=0
    #allocation0 [shape = 'u8[32768]{0}', space=vmem, size = 0x8000, scoped, tag = 'scoped mem for input reshape']
    %s3 = sshll.u32 1, 4
    %s4 = ssub.s32 %s3, 1
    %s5 = smul.addr 4, 7
    %s6 = scalar_lea.vmem %s0, %s5
    %v7 = vld [vmem:[%s6] sm:%s4]
    %s8 = scalar_lea.vmem [#allocation0], 56
    %9 = vst [vmem:[%s8] sm:%s4] %v7
    %s10 = smul.addr 4, 6
    %s11 = scalar_lea.vmem %s0, %s10
    %v12 = vld [vmem:[%s11] sm:%s4]
    %s13 = scalar_lea.vmem [#allocation0], 48
    %14 = vst [vmem:[%s13] sm:%s4] %v12
    %s15 = smul.addr 4, 5
    %s16 = scalar_lea.vmem %s0, %s15
    %v17 = vld [vmem:[%s16] sm:%s4]
    %s18 = scalar_lea.vmem [#allocation0], 40
    %19 = vst [vmem:[%s18] sm:%s4] %v17
    %s20 = smul.addr 4, 4
    %s21 = scalar_lea.vmem %s0, %s20
    %v22 = vld [vmem:[%s21] sm:%s4]
    %s23 = scalar_lea.vmem [#allocation0], 32
    %24 = vst [vmem:[%s23] sm:%s4] %v22
    %s25 = smul.addr 4, 3
    %s26 = scalar_lea.vmem %s0, %s25
    %v27 = vld [vmem:[%s26] sm:%s4]
    %s28 = scalar_lea.vmem [#allocation0], 24
    %29 = vst [vmem:[%s28] sm:%s4] %v27
    %s30 = smul.addr 4, 2
    %s31 = scalar_lea.vmem %s0, %s30
    %v32 = vld [vmem:[%s31] sm:%s4]
    %s33 = scalar_lea.vmem [#allocation0], 16
    %34 = vst [vmem:[%s33] sm:%s4] %v32
    %s35 = scalar_lea.vmem %s0, 4
    %v36 = vld [vmem:[%s35] sm:%s4]
    %s37 = scalar_lea.vmem [#allocation0], 8
    %38 = vst [vmem:[%s37] sm:%s4] %v36
    %v39 = vld [vmem:[%s0] sm:%s4]
    %40 = vst [vmem:[#allocation0] sm:%s4] %v39
    %v41 = vld [vmem:[#allocation0] ss:$8 sm:$0xf]
    %v42 = vld [vmem:[#allocation0] ss:$8 sm:$0xf0]
    %vm43 = vcmask 1047556
    %v44 = vsel %vm43, %v42, %v41
    %vm45 = vcmask 64512
    %46 = vst.msk [vmem:[%s1] sm:$0xff] %vm45, %v44
    %s47 = scalar_lea.vmem [#allocation0], 3
    %v48 = vld [vmem:[%s47] ss:$8 sm:$0xf]
    %s49 = scalar_lea.vmem [#allocation0], 3
    %v50 = vld [vmem:[%s49] ss:$8 sm:$0xf0]
    %vm51 = vcmask 1047556
    %v52 = vsel %vm51, %v50, %v48
    %53 = vrot.lane.b32.xlu0 %v52, 24
    %v54 = vpop.permute.xlu0 %53
    %vm55 = vcmask 261312
    %56 = vst.msk [vmem:[%s1] sm:$0xff] %vm55, %v54
    %s57 = scalar_lea.vmem [#allocation0], 2
    %v58 = vld [vmem:[%s57] ss:$8 sm:$0xf]
    %s59 = scalar_lea.vmem [#allocation0], 2
    %v60 = vld [vmem:[%s59] ss:$8 sm:$0xf0]
    %vm61 = vcmask 1047556
    %v62 = vsel %vm61, %v60, %v58
    %63 = vrot.lane.b32.xlu0 %v62, 16
    %v64 = vpop.permute.xlu0 %63
    %vm65 = vcmask 195712
    %66 = vst.msk [vmem:[%s1] sm:$0xff] %vm65, %v64
    %s67 = scalar_lea.vmem [#allocation0], 1
    %v68 = vld [vmem:[%s67] ss:$8 sm:$0xf]
    %s69 = scalar_lea.vmem [#allocation0], 1
    %v70 = vld [vmem:[%s69] ss:$8 sm:$0xf0]
    %vm71 = vcmask 1047556
    %v72 = vsel %vm71, %v70, %v68
    %73 = vrot.lane.b32.xlu0 %v72, 8
    %v74 = vpop.permute.xlu0 %73
    %vm75 = vcmask 130112
    %76 = vst.msk [vmem:[%s1] sm:$0xff] %vm75, %v74

// kernel: han_forward.1
$region0: #{han_forward.1}
  #allocation0 [shape = 'u32[]', space=smem, size = 0x4, offset = 0x4, fixed_abs, tag = 'smem constant byte address 0x4 - core index']
  #allocation1 [shape = 'u32[144,128]{1,0:T(1,128)}', space=vmem, size = 0x12000, scoped, tag = 'internal scratch']
  %s0 = inlined_call_operand.vmem [shape: f32[368,32], index: 0, kind: input, shape index: {}]
  %s1 = inlined_call_operand.vmem [shape: f32[32,32], index: 1, kind: input, shape index: {}]
  %s2 = inlined_call_operand.vmem [shape: f32[8,2], index: 2, kind: output, shape index: {}]
  %s3 = sld [smem:[#allocation0]]
  $region18: #{han_forward.1} parent=0
    _
  %s5 = ssub.s32 1, %s3
  %s6 = scalar_select 0, %s5, %s3
  // Predicated region
  $region2: #{han_forward.1} parent=0 // pred_check
    _
  $region3: #{han_forward.1} parent=0 // pred_check_branch
    %8 = sbr.rel (0) target = $region5
  $region4: #{han_forward.1} parent=0 // pred_region
    _
  $region5: #{han_forward.1} parent=0 // pred_fallthru
    _
  // Predicated region
  $region6: #{han_forward.1} parent=0 // pred_check
    _
  $region7: #{han_forward.1} parent=0 // pred_check_branch
    %10 = sbr.rel (0) target = $region9
  $region8: #{han_forward.1} parent=0 // pred_region
    _
  $region9: #{han_forward.1} parent=0 // pred_fallthru
    _
  %v11 = vld [vmem:[%s1] sm:$0xff]
  %v12 = vld [vmem:[%s1 + $0x8] sm:$0xff]
  %v13 = vld [vmem:[%s1 + $0x10] sm:$0xff]
  %v14 = vld [vmem:[%s1 + $0x18] sm:$0xff]
  %v15 = vld [vmem:[%s0] sm:$0xff]
  %v16 = vld [vmem:[%s0 + $0x8] sm:$0xff]
  %v17 = vld [vmem:[%s0 + $0x10] sm:$0xff]
  %v18 = vld [vmem:[%s0 + $0x18] sm:$0xff]
  %v19 = vld [vmem:[%s0 + $0x40] sm:$0xff]
  %vm20 = vcmask 261120
  %v22 = vsel %vm20, %v11, 0
  %24 = vmatprep.subr.mxu0 0.0
  %25 = vmatpush1.msra.mxu0 0.0
  %26 = vmatprep.subr.mxu0 0.0
  %27 = vmatpush1.msra.mxu0 0.0
  %28 = vmatprep.subr.mxu0 0.0
  %29 = vmatpush1.msra.mxu0 0.0
  %30 = vmatprep.subr.mxu0 0.0
  %31 = vmatpush1.msra.mxu0 0.0
  %32 = vmatprep.subr.mxu0 0.0
  %33 = vmatpush1.msra.mxu0 0.0
  %34 = vmatprep.subr.mxu0 0.0
  %35 = vmatpush1.msra.mxu0 0.0
  %36 = vmatprep.subr.mxu0 0.0
  %37 = vmatpush1.msra.mxu0 0.0
  %38 = vmatprep.subr.mxu0 0.0
  %39 = vmatpush1.msra.mxu0 0.0
  %40 = vmatprep.subr.mxu0 0.0
  %41 = vmatpush1.msra.mxu0 0.0
  %42 = vmatprep.subr.mxu0 0.0
  %43 = vmatpush1.msra.mxu0 0.0
  %44 = vmatprep.subr.mxu0 0.0
  %45 = vmatpush1.msra.mxu0 0.0
  %46 = vmatprep.subr.mxu0 0.0
  %47 = vmatpush1.msra.mxu0 0.0
  %48 = vmatprep.subr.mxu0 0.0
  %49 = vmatpush1.msra.mxu0 %v18
  %50 = vmatprep.subr.mxu0 0.0
  %51 = vmatpush1.msra.mxu0 %v17
  %52 = vmatprep.subr.mxu0 0.0
  %53 = vmatpush1.msra.mxu0 %v16
  %54 = vmatprep.subr.mxu0 0.0
  %55 = vmatpush1.msra.mxu0 %v15
  %56 = vmatprep.subr.mxu0 0.0
  %57 = vmatpush2.msra.mxu0 0.0
  %58 = vmatprep.subr.mxu0 0.0
  %59 = vmatpush2.msra.mxu0 0.0
  %60 = vmatprep.subr.mxu0 0.0
  %61 = vmatpush2.msra.mxu0 0.0
  %62 = vmatprep.subr.mxu0 0.0
  %63 = vmatpush2.msra.mxu0 0.0
  %64 = vmatprep.subr.mxu0 0.0
  %65 = vmatpush2.msra.mxu0 0.0
  %66 = vmatprep.subr.mxu0 0.0
  %67 = vmatpush2.msra.mxu0 0.0
  %68 = vmatprep.subr.mxu0 0.0
  %69 = vmatpush2.msra.mxu0 0.0
  %70 = vmatprep.subr.mxu0 0.0
  %71 = vmatpush2.msra.mxu0 0.0
  %72 = vmatprep.subr.mxu0 0.0
  %73 = vmatpush2.msra.mxu0 0.0
  %74 = vmatprep.subr.mxu0 0.0
  %75 = vmatpush2.msra.mxu0 0.0
  %76 = vmatprep.subr.mxu0 0.0
  %77 = vmatpush2.msra.mxu0 0.0
  %78 = vmatprep.subr.mxu0 0.0
  %79 = vmatpush2.msra.mxu0 0.0
  %80 = vmatprep.subr.mxu0 0.0
  %81 = vmatpush2.msra.mxu0 0.0
  %82 = vmatprep.subr.mxu0 0.0
  %83 = vmatpush2.msra.mxu0 0.0
  %84 = vmatprep.subr.mxu0 0.0
  %85 = vmatpush2.msra.mxu0 0.0
  %86 = vmatprep.subr.mxu0 0.0
  %87 = vmatpush2.msra.mxu0 0.0
  %88 = vmatprep.mubr.f32.mxu0 0.0
  %89 = vmatmul.mubr.f32.gmra.mxu0 %v22
  %v90 = vpop.f32.mrf.mxu0
  %v91 = vadd.f32 %v19, %v90
  %v92 = vpop.f32.mrf.mxu0
  %93 = vdwg.mxu0
  %v94 = vld [vmem:[%s0 + $0x20] sm:$0xff]
  %v95 = vld [vmem:[%s0 + $0x28] sm:$0xff]
  %v96 = vld [vmem:[%s0 + $0x30] sm:$0xff]
  %v97 = vld [vmem:[%s0 + $0x38] sm:$0xff]
  %v98 = vld [vmem:[%s0 + $0x48] sm:$0xff]
  %v100 = vsel %vm20, %v12, 0
  %102 = vmatprep.subr.mxu0 0.0
  %103 = vmatpush1.msra.mxu0 0.0
  %104 = vmatprep.subr.mxu0 0.0
  %105 = vmatpush1.msra.mxu0 0.0
  %106 = vmatprep.subr.mxu0 0.0
  %107 = vmatpush1.msra.mxu0 0.0
  %108 = vmatprep.subr.mxu0 0.0
  %109 = vmatpush1.msra.mxu0 0.0
  %110 = vmatprep.subr.mxu0 0.0
  %111 = vmatpush1.msra.mxu0 0.0
  %112 = vmatprep.subr.mxu0 0.0
  %113 = vmatpush1.msra.mxu0 0.0
  %114 = vmatprep.subr.mxu0 0.0
  %115 = vmatpush1.msra.mxu0 0.0
  %116 = vmatprep.subr.mxu0 0.0
  %117 = vmatpush1.msra.mxu0 0.0
  %118 = vmatprep.subr.mxu0 0.0
  %119 = vmatpush1.msra.mxu0 0.0
  %120 = vmatprep.subr.mxu0 0.0
  %121 = vmatpush1.msra.mxu0 0.0
  %122 = vmatprep.subr.mxu0 0.0
  %123 = vmatpush1.msra.mxu0 0.0
  %124 = vmatprep.subr.mxu0 0.0
  %125 = vmatpush1.msra.mxu0 0.0
  %126 = vmatprep.subr.mxu0 0.0
  %127 = vmatpush1.msra.mxu0 %v97
  %128 = vmatprep.subr.mxu0 0.0
  %129 = vmatpush1.msra.mxu0 %v96
  %130 = vmatprep.subr.mxu0 0.0
  %131 = vmatpush1.msra.mxu0 %v95
  %132 = vmatprep.subr.mxu0 0.0
  %133 = vmatpush1.msra.mxu0 %v94
  %134 = vmatprep.subr.mxu0 0.0
  %135 = vmatpush2.msra.mxu0 0.0
  %136 = vmatprep.subr.mxu0 0.0
  %137 = vmatpush2.msra.mxu0 0.0
  %138 = vmatprep.subr.mxu0 0.0
  %139 = vmatpush2.msra.mxu0 0.0
  %140 = vmatprep.subr.mxu0 0.0
  %141 = vmatpush2.msra.mxu0 0.0
  %142 = vmatprep.subr.mxu0 0.0
  %143 = vmatpush2.msra.mxu0 0.0
  %144 = vmatprep.subr.mxu0 0.0
  %145 = vmatpush2.msra.mxu0 0.0
  %146 = vmatprep.subr.mxu0 0.0
  %147 = vmatpush2.msra.mxu0 0.0
  %148 = vmatprep.subr.mxu0 0.0
  %149 = vmatpush2.msra.mxu0 0.0
  %150 = vmatprep.subr.mxu0 0.0
  %151 = vmatpush2.msra.mxu0 0.0
  %152 = vmatprep.subr.mxu0 0.0
  %153 = vmatpush2.msra.mxu0 0.0
  %154 = vmatprep.subr.mxu0 0.0
  %155 = vmatpush2.msra.mxu0 0.0
  %156 = vmatprep.subr.mxu0 0.0
  %157 = vmatpush2.msra.mxu0 0.0
  %158 = vmatprep.subr.mxu0 0.0
  %159 = vmatpush2.msra.mxu0 0.0
  %160 = vmatprep.subr.mxu0 0.0
  %161 = vmatpush2.msra.mxu0 0.0
  %162 = vmatprep.subr.mxu0 0.0
  %163 = vmatpush2.msra.mxu0 0.0
  %164 = vmatprep.subr.mxu0 0.0
  %165 = vmatpush2.msra.mxu0 0.0
  %166 = vmatprep.mubr.f32.mxu0 0.0
  %167 = vmatmul.mubr.f32.gmra.mxu0 %v100
  %v168 = vpop.f32.mrf.mxu0
  %v169 = vadd.f32 %v98, %v168
  %v170 = vpop.f32.mrf.mxu0
  %171 = vdwg.mxu0
  %v172 = vld [vmem:[%s0 + $0xd0] sm:$0xff]
  %v173 = vld [vmem:[%s0 + $0xd8] sm:$0xff]
  %v174 = vld [vmem:[%s0 + $0xe0] sm:$0xff]
  %v175 = vld [vmem:[%s0 + $0xe8] sm:$0xff]
  %v176 = vld [vmem:[%s0 + $0xf0] sm:$0xff]
  %v177 = vld [vmem:[%s0 + $0xf8] sm:$0xff]
  %v178 = vld [vmem:[%s0 + $0x100] sm:$0xff]
  %v179 = vld [vmem:[%s0 + $0x108] sm:$0xff]
  %v180 = vld [vmem:[%s0 + $0x110] sm:$0xff]
  %v181 = vld [vmem:[%s0 + $0x50] sm:$0xff]
  %v182 = vld [vmem:[%s0 + $0x58] sm:$0xff]
  %v183 = vld [vmem:[%s0 + $0x60] sm:$0xff]
  %v184 = vld [vmem:[%s0 + $0x68] sm:$0xff]
  %v185 = vld [vmem:[%s0 + $0x70] sm:$0xff]
  %v186 = vld [vmem:[%s0 + $0x78] sm:$0xff]
  %v187 = vld [vmem:[%s0 + $0x80] sm:$0xff]
  %v188 = vld [vmem:[%s0 + $0x88] sm:$0xff]
  %v190 = vsel %vm20, %v91, 0
  %192 = vmatprep.subr.mxu0 0.0
  %193 = vmatpush1.msra.mxu0 0.0
  %194 = vmatprep.subr.mxu0 0.0
  %195 = vmatpush1.msra.mxu0 0.0
  %196 = vmatprep.subr.mxu0 0.0
  %197 = vmatpush1.msra.mxu0 0.0
  %198 = vmatprep.subr.mxu0 0.0
  %199 = vmatpush1.msra.mxu0 0.0
  %200 = vmatprep.subr.mxu0 0.0
  %201 = vmatpush1.msra.mxu0 0.0
  %202 = vmatprep.subr.mxu0 0.0
  %203 = vmatpush1.msra.mxu0 0.0
  %204 = vmatprep.subr.mxu0 0.0
  %205 = vmatpush1.msra.mxu0 0.0
  %206 = vmatprep.subr.mxu0 0.0
  %207 = vmatpush1.msra.mxu0 0.0
  %208 = vmatprep.subr.mxu0 0.0
  %209 = vmatpush1.msra.mxu0 0.0
  %210 = vmatprep.subr.mxu0 0.0
  %211 = vmatpush1.msra.mxu0 0.0
  %212 = vmatprep.subr.mxu0 0.0
  %213 = vmatpush1.msra.mxu0 0.0
  %214 = vmatprep.subr.mxu0 0.0
  %215 = vmatpush1.msra.mxu0 0.0
  %216 = vmatprep.subr.mxu0 0.0
  %217 = vmatpush1.msra.mxu0 %v188
  %218 = vmatprep.subr.mxu0 0.0
  %219 = vmatpush1.msra.mxu0 %v187
  %220 = vmatprep.subr.mxu0 0.0
  %221 = vmatpush1.msra.mxu0 %v186
  %222 = vmatprep.subr.mxu0 0.0
  %223 = vmatpush1.msra.mxu0 %v185
  %224 = vmatprep.subr.mxu0 0.0
  %225 = vmatpush2.msra.mxu0 0.0
  %226 = vmatprep.subr.mxu0 0.0
  %227 = vmatpush2.msra.mxu0 0.0
  %228 = vmatprep.subr.mxu0 0.0
  %229 = vmatpush2.msra.mxu0 0.0
  %230 = vmatprep.subr.mxu0 0.0
  %231 = vmatpush2.msra.mxu0 0.0
  %232 = vmatprep.subr.mxu0 0.0
  %233 = vmatpush2.msra.mxu0 0.0
  %234 = vmatprep.subr.mxu0 0.0
  %235 = vmatpush2.msra.mxu0 0.0
  %236 = vmatprep.subr.mxu0 0.0
  %237 = vmatpush2.msra.mxu0 0.0
  %238 = vmatprep.subr.mxu0 0.0
  %239 = vmatpush2.msra.mxu0 0.0
  %240 = vmatprep.subr.mxu0 0.0
  %241 = vmatpush2.msra.mxu0 0.0
  %242 = vmatprep.subr.mxu0 0.0
  %243 = vmatpush2.msra.mxu0 0.0
  %244 = vmatprep.subr.mxu0 0.0
  %245 = vmatpush2.msra.mxu0 0.0
  %246 = vmatprep.subr.mxu0 0.0
  %247 = vmatpush2.msra.mxu0 0.0
  %248 = vmatprep.subr.mxu0 0.0
  %249 = vmatpush2.msra.mxu0 0.0
  %250 = vmatprep.subr.mxu0 0.0
  %251 = vmatpush2.msra.mxu0 0.0
  %252 = vmatprep.subr.mxu0 0.0
  %253 = vmatpush2.msra.mxu0 0.0
  %254 = vmatprep.subr.mxu0 0.0
  %255 = vmatpush2.msra.mxu0 0.0
  %256 = vmatprep.mubr.f32.mxu0 0.0
  %257 = vmatmul.mubr.f32.gmra.mxu0 %v190
  %v258 = vpop.f32.mrf.mxu0
  %v259 = vadd.f32 0.0, %v258
  %v260 = vpop.f32.mrf.mxu0
  %261 = vdwg.mxu0
  %v262 = vmul.f32 %v259, %v172
  %vm263 = vcmask 64512
  %v265 = vsel %vm263, 1.0, 0
  %267 = vmatprep.subr.mxu0 0.0
  %268 = vmatpush1.msra.mxu0 0.0
  %269 = vmatprep.subr.mxu0 0.0
  %270 = vmatpush1.msra.mxu0 0.0
  %271 = vmatprep.subr.mxu0 0.0
  %272 = vmatpush1.msra.mxu0 0.0
  %273 = vmatprep.subr.mxu0 0.0
  %274 = vmatpush1.msra.mxu0 0.0
  %275 = vmatprep.subr.mxu0 0.0
  %276 = vmatpush1.msra.mxu0 0.0
  %277 = vmatprep.subr.mxu0 0.0
  %278 = vmatpush1.msra.mxu0 0.0
  %279 = vmatprep.subr.mxu0 0.0
  %280 = vmatpush1.msra.mxu0 0.0
  %281 = vmatprep.subr.mxu0 0.0
  %282 = vmatpush1.msra.mxu0 0.0
  %283 = vmatprep.subr.mxu0 0.0
  %284 = vmatpush1.msra.mxu0 0.0
  %285 = vmatprep.subr.mxu0 0.0
  %286 = vmatpush1.msra.mxu0 0.0
  %287 = vmatprep.subr.mxu0 0.0
  %288 = vmatpush1.msra.mxu0 0.0
  %289 = vmatprep.subr.mxu0 0.0
  %290 = vmatpush1.msra.mxu0 0.0
  %291 = vmatprep.subr.mxu0 0.0
  %292 = vmatpush1.msra.mxu0 0.0
  %293 = vmatprep.subr.mxu0 0.0
  %294 = vmatpush1.msra.mxu0 0.0
  %295 = vmatprep.subr.mxu0 0.0
  %296 = vmatpush1.msra.mxu0 0.0
  %297 = vmatprep.subr.mxu0 0.0
  %298 = vmatpush1.msra.mxu0 %v262
  %299 = vmatprep.subr.mxu0 0.0
  %300 = vmatpush2.msra.mxu0 0.0
  %301 = vmatprep.subr.mxu0 0.0
  %302 = vmatpush2.msra.mxu0 0.0
  %303 = vmatprep.subr.mxu0 0.0
  %304 = vmatpush2.msra.mxu0 0.0
  %305 = vmatprep.subr.mxu0 0.0
  %306 = vmatpush2.msra.mxu0 0.0
  %307 = vmatprep.subr.mxu0 0.0
  %308 = vmatpush2.msra.mxu0 0.0
  %309 = vmatprep.subr.mxu0 0.0
  %310 = vmatpush2.msra.mxu0 0.0
  %311 = vmatprep.subr.mxu0 0.0
  %312 = vmatpush2.msra.mxu0 0.0
  %313 = vmatprep.subr.mxu0 0.0
  %314 = vmatpush2.msra.mxu0 0.0
  %315 = vmatprep.subr.mxu0 0.0
  %316 = vmatpush2.msra.mxu0 0.0
  %317 = vmatprep.subr.mxu0 0.0
  %318 = vmatpush2.msra.mxu0 0.0
  %319 = vmatprep.subr.mxu0 0.0
  %320 = vmatpush2.msra.mxu0 0.0
  %321 = vmatprep.subr.mxu0 0.0
  %322 = vmatpush2.msra.mxu0 0.0
  %323 = vmatprep.subr.mxu0 0.0
  %324 = vmatpush2.msra.mxu0 0.0
  %325 = vmatprep.subr.mxu0 0.0
  %326 = vmatpush2.msra.mxu0 0.0
  %327 = vmatprep.subr.mxu0 0.0
  %328 = vmatpush2.msra.mxu0 0.0
  %329 = vmatprep.subr.mxu0 0.0
  %330 = vmatpush2.msra.mxu0 0.0
  %331 = vmatprep.mubr.f32.mxu0 0.0
  %332 = vmatmul.mubr.f32.gmra.mxu0 %v265
  %v333 = vpop.f32.mrf.mxu0
  %v334 = vadd.f32 0.0, %v333
  %v335 = vpop.f32.mrf.mxu0
  %336 = vdwg.mxu0
  %v337 = vlaneseq
  %v338 = vshrl.u32 %v337, 7
  %v339 = vsub.s32 0, %v338
  %v340 = vrot.slane %v334, %v339
  %v342 = vsel %vm20, %v169, 0
  %344 = vmatprep.subr.mxu0 0.0
  %345 = vmatpush1.msra.mxu0 0.0
  %346 = vmatprep.subr.mxu0 0.0
  %347 = vmatpush1.msra.mxu0 0.0
  %348 = vmatprep.subr.mxu0 0.0
  %349 = vmatpush1.msra.mxu0 0.0
  %350 = vmatprep.subr.mxu0 0.0
  %351 = vmatpush1.msra.mxu0 0.0
  %352 = vmatprep.subr.mxu0 0.0
  %353 = vmatpush1.msra.mxu0 0.0
  %354 = vmatprep.subr.mxu0 0.0
  %355 = vmatpush1.msra.mxu0 0.0
  %356 = vmatprep.subr.mxu0 0.0
  %357 = vmatpush1.msra.mxu0 0.0
  %358 = vmatprep.subr.mxu0 0.0
  %359 = vmatpush1.msra.mxu0 0.0
  %360 = vmatprep.subr.mxu0 0.0
  %361 = vmatpush1.msra.mxu0 0.0
  %362 = vmatprep.subr.mxu0 0.0
  %363 = vmatpush1.msra.mxu0 0.0
  %364 = vmatprep.subr.mxu0 0.0
  %365 = vmatpush1.msra.mxu0 0.0
  %366 = vmatprep.subr.mxu0 0.0
  %367 = vmatpush1.msra.mxu0 0.0
  %368 = vmatprep.subr.mxu0 0.0
  %369 = vmatpush1.msra.mxu0 %v184
  %370 = vmatprep.subr.mxu0 0.0
  %371 = vmatpush1.msra.mxu0 %v183
  %372 = vmatprep.subr.mxu0 0.0
  %373 = vmatpush1.msra.mxu0 %v182
  %374 = vmatprep.subr.mxu0 0.0
  %375 = vmatpush1.msra.mxu0 %v181
  %376 = vmatprep.subr.mxu0 0.0
  %377 = vmatpush2.msra.mxu0 0.0
  %378 = vmatprep.subr.mxu0 0.0
  %379 = vmatpush2.msra.mxu0 0.0
  %380 = vmatprep.subr.mxu0 0.0
  %381 = vmatpush2.msra.mxu0 0.0
  %382 = vmatprep.subr.mxu0 0.0
  %383 = vmatpush2.msra.mxu0 0.0
  %384 = vmatprep.subr.mxu0 0.0
  %385 = vmatpush2.msra.mxu0 0.0
  %386 = vmatprep.subr.mxu0 0.0
  %387 = vmatpush2.msra.mxu0 0.0
  %388 = vmatprep.subr.mxu0 0.0
  %389 = vmatpush2.msra.mxu0 0.0
  %390 = vmatprep.subr.mxu0 0.0
  %391 = vmatpush2.msra.mxu0 0.0
  %392 = vmatprep.subr.mxu0 0.0
  %393 = vmatpush2.msra.mxu0 0.0
  %394 = vmatprep.subr.mxu0 0.0
  %395 = vmatpush2.msra.mxu0 0.0
  %396 = vmatprep.subr.mxu0 0.0
  %397 = vmatpush2.msra.mxu0 0.0
  %398 = vmatprep.subr.mxu0 0.0
  %399 = vmatpush2.msra.mxu0 0.0
  %400 = vmatprep.subr.mxu0 0.0
  %401 = vmatpush2.msra.mxu0 0.0
  %402 = vmatprep.subr.mxu0 0.0
  %403 = vmatpush2.msra.mxu0 0.0
  %404 = vmatprep.subr.mxu0 0.0
  %405 = vmatpush2.msra.mxu0 0.0
  %406 = vmatprep.subr.mxu0 0.0
  %407 = vmatpush2.msra.mxu0 0.0
  %408 = vmatprep.mubr.f32.mxu0 0.0
  %409 = vmatmul.mubr.f32.gmra.mxu0 %v342
  %v410 = vpop.f32.mrf.mxu0
  %v411 = vadd.f32 %v340, %v410
  %v412 = vpop.f32.mrf.mxu0
  %413 = vdwg.mxu0
  %v414 = vmul.f32 %v411, 0.2
  %v415 = vmax.f32 %v411, %v414
  %v416 = vadd.f32 %v415, %v13
  %v417 = vsel %vm20, %v416, -inf
  %418 = vmax.xlane.f32.xlu0 %v417
  %v419 = vpop.xlane.xlu0 %418
  %v420 = vmax.f32 %v419, -1e+20
  %v421 = vsub.f32 %v416, %v420
  %v422 = vmul.f32 %v421, 1.442695
  %v423 = vpow.pop %v422
  %v425 = vsel %vm263, %v177, 0
  %v428 = vsel %vm263, %v178, 0
  %v431 = vsel %vm263, %v179, 0
  %v434 = vsel %vm263, %v180, 0
  %436 = vmatprep.subr.mxu0 0.0
  %437 = vmatpush1.msra.mxu0 0.0
  %438 = vmatprep.subr.mxu0 0.0
  %439 = vmatpush1.msra.mxu0 0.0
  %440 = vmatprep.subr.mxu0 0.0
  %441 = vmatpush1.msra.mxu0 0.0
  %442 = vmatprep.subr.mxu0 0.0
  %443 = vmatpush1.msra.mxu0 0.0
  %444 = vmatprep.subr.mxu0 0.0
  %445 = vmatpush1.msra.mxu0 0.0
  %446 = vmatprep.subr.mxu0 0.0
  %447 = vmatpush1.msra.mxu0 0.0
  %448 = vmatprep.subr.mxu0 0.0
  %449 = vmatpush1.msra.mxu0 0.0
  %450 = vmatprep.subr.mxu0 0.0
  %451 = vmatpush1.msra.mxu0 0.0
  %452 = vmatprep.subr.mxu0 0.0
  %453 = vmatpush1.msra.mxu0 0.0
  %454 = vmatprep.subr.mxu0 0.0
  %455 = vmatpush1.msra.mxu0 0.0
  %456 = vmatprep.subr.mxu0 0.0
  %457 = vmatpush1.msra.mxu0 0.0
  %458 = vmatprep.subr.mxu0 0.0
  %459 = vmatpush1.msra.mxu0 0.0
  %460 = vmatprep.subr.mxu0 0.0
  %461 = vmatpush1.msra.mxu0 0.0
  %462 = vmatprep.subr.mxu0 0.0
  %463 = vmatpush1.msra.mxu0 0.0
  %464 = vmatprep.subr.mxu0 0.0
  %465 = vmatpush1.msra.mxu0 0.0
  %466 = vmatprep.subr.mxu0 0.0
  %467 = vmatpush1.msra.mxu0 %v91
  %468 = vmatprep.subr.mxu0 0.0
  %469 = vmatpush2.msra.mxu0 0.0
  %470 = vmatprep.subr.mxu0 0.0
  %471 = vmatpush2.msra.mxu0 0.0
  %472 = vmatprep.subr.mxu0 0.0
  %473 = vmatpush2.msra.mxu0 0.0
  %474 = vmatprep.subr.mxu0 0.0
  %475 = vmatpush2.msra.mxu0 0.0
  %476 = vmatprep.subr.mxu0 0.0
  %477 = vmatpush2.msra.mxu0 0.0
  %478 = vmatprep.subr.mxu0 0.0
  %479 = vmatpush2.msra.mxu0 0.0
  %480 = vmatprep.subr.mxu0 0.0
  %481 = vmatpush2.msra.mxu0 0.0
  %482 = vmatprep.subr.mxu0 0.0
  %483 = vmatpush2.msra.mxu0 0.0
  %484 = vmatprep.subr.mxu0 0.0
  %485 = vmatpush2.msra.mxu0 0.0
  %486 = vmatprep.subr.mxu0 0.0
  %487 = vmatpush2.msra.mxu0 0.0
  %488 = vmatprep.subr.mxu0 0.0
  %489 = vmatpush2.msra.mxu0 0.0
  %490 = vmatprep.subr.mxu0 0.0
  %491 = vmatpush2.msra.mxu0 0.0
  %492 = vmatprep.subr.mxu0 0.0
  %493 = vmatpush2.msra.mxu0 0.0
  %494 = vmatprep.subr.mxu0 0.0
  %495 = vmatpush2.msra.mxu0 0.0
  %496 = vmatprep.subr.mxu0 0.0
  %497 = vmatpush2.msra.mxu0 0.0
  %498 = vmatprep.subr.mxu0 0.0
  %499 = vmatpush2.msra.mxu0 0.0
  %500 = vmatprep.mubr.f32.mxu0 0.0
  %501 = vmatmul.mubr.f32.gmra.mxu0 %v425
  %v502 = vpop.f32.mrf.mxu0
  %v503 = vadd.f32 0.0, %v502
  %v504 = vpop.f32.mrf.mxu0
  %505 = vmatprep.mubr.f32.mxu0 0.0
  %506 = vmatmul.mubr.f32.gmra.mxu0 %v428
  %v507 = vpop.f32.mrf.mxu0
  %v508 = vadd.f32 0.0, %v507
  %v509 = vpop.f32.mrf.mxu0
  %510 = vmatprep.mubr.f32.mxu0 0.0
  %511 = vmatmul.mubr.f32.gmra.mxu0 %v431
  %v512 = vpop.f32.mrf.mxu0
  %v513 = vadd.f32 0.0, %v512
  %v514 = vpop.f32.mrf.mxu0
  %515 = vmatprep.mubr.f32.mxu0 0.0
  %516 = vmatmul.mubr.f32.gmra.mxu0 %v434
  %v517 = vpop.f32.mrf.mxu0
  %v518 = vadd.f32 0.0, %v517
  %v519 = vpop.f32.mrf.mxu0
  %520 = vdwg.mxu0
  %v521 = vmul.f32 %v503, %v173
  %v522 = vmul.f32 %v508, %v174
  %v523 = vmul.f32 %v513, %v175
  %v524 = vmul.f32 %v518, %v176
  %v526 = vsel %vm20, %v423, 0
  %528 = vmatprep.subr.mxu0 0.0
  %529 = vmatpush1.msra.mxu0 0.0
  %530 = vmatprep.subr.mxu0 0.0
  %531 = vmatpush1.msra.mxu0 0.0
  %532 = vmatprep.subr.mxu0 0.0
  %533 = vmatpush1.msra.mxu0 0.0
  %534 = vmatprep.subr.mxu0 0.0
  %535 = vmatpush1.msra.mxu0 0.0
  %536 = vmatprep.subr.mxu0 0.0
  %537 = vmatpush1.msra.mxu0 0.0
  %538 = vmatprep.subr.mxu0 0.0
  %539 = vmatpush1.msra.mxu0 0.0
  %540 = vmatprep.subr.mxu0 0.0
  %541 = vmatpush1.msra.mxu0 0.0
  %542 = vmatprep.subr.mxu0 0.0
  %543 = vmatpush1.msra.mxu0 0.0
  %544 = vmatprep.subr.mxu0 0.0
  %545 = vmatpush1.msra.mxu0 0.0
  %546 = vmatprep.subr.mxu0 0.0
  %547 = vmatpush1.msra.mxu0 0.0
  %548 = vmatprep.subr.mxu0 0.0
  %549 = vmatpush1.msra.mxu0 0.0
  %550 = vmatprep.subr.mxu0 0.0
  %551 = vmatpush1.msra.mxu0 0.0
  %552 = vmatprep.subr.mxu0 0.0
  %553 = vmatpush1.msra.mxu0 %v524
  %554 = vmatprep.subr.mxu0 0.0
  %555 = vmatpush1.msra.mxu0 %v523
  %556 = vmatprep.subr.mxu0 0.0
  %557 = vmatpush1.msra.mxu0 %v522
  %558 = vmatprep.subr.mxu0 0.0
  %559 = vmatpush1.msra.mxu0 %v521
  %560 = vmatprep.subr.mxu0 0.0
  %561 = vmatpush2.msra.mxu0 0.0
  %562 = vmatprep.subr.mxu0 0.0
  %563 = vmatpush2.msra.mxu0 0.0
  %564 = vmatprep.subr.mxu0 0.0
  %565 = vmatpush2.msra.mxu0 0.0
  %566 = vmatprep.subr.mxu0 0.0
  %567 = vmatpush2.msra.mxu0 0.0
  %568 = vmatprep.subr.mxu0 0.0
  %569 = vmatpush2.msra.mxu0 0.0
  %570 = vmatprep.subr.mxu0 0.0
  %571 = vmatpush2.msra.mxu0 0.0
  %572 = vmatprep.subr.mxu0 0.0
  %573 = vmatpush2.msra.mxu0 0.0
  %574 = vmatprep.subr.mxu0 0.0
  %575 = vmatpush2.msra.mxu0 0.0
  %576 = vmatprep.subr.mxu0 0.0
  %577 = vmatpush2.msra.mxu0 0.0
  %578 = vmatprep.subr.mxu0 0.0
  %579 = vmatpush2.msra.mxu0 0.0
  %580 = vmatprep.subr.mxu0 0.0
  %581 = vmatpush2.msra.mxu0 0.0
  %582 = vmatprep.subr.mxu0 0.0
  %583 = vmatpush2.msra.mxu0 0.0
  %584 = vmatprep.subr.mxu0 0.0
  %585 = vmatpush2.msra.mxu0 0.0
  %586 = vmatprep.subr.mxu0 0.0
  %587 = vmatpush2.msra.mxu0 0.0
  %588 = vmatprep.subr.mxu0 0.0
  %589 = vmatpush2.msra.mxu0 0.0
  %590 = vmatprep.subr.mxu0 0.0
  %591 = vmatpush2.msra.mxu0 0.0
  %592 = vmatprep.mubr.f32.mxu0 0.0
  %593 = vmatmul.mubr.f32.gmra.mxu0 %v526
  %v594 = vpop.f32.mrf.mxu0
  %v595 = vadd.f32 0.0, %v594
  %v596 = vpop.f32.mrf.mxu0
  %597 = vdwg.mxu0
  %598 = vmatprep.subr.mxu0 0.0
  %599 = vmatpush1.msra.mxu0 0.0
  %600 = vmatprep.subr.mxu0 0.0
  %601 = vmatpush1.msra.mxu0 0.0
  %602 = vmatprep.subr.mxu0 0.0
  %603 = vmatpush1.msra.mxu0 0.0
  %604 = vmatprep.subr.mxu0 0.0
  %605 = vmatpush1.msra.mxu0 0.0
  %606 = vmatprep.subr.mxu0 0.0
  %607 = vmatpush1.msra.mxu0 0.0
  %608 = vmatprep.subr.mxu0 0.0
  %609 = vmatpush1.msra.mxu0 0.0
  %610 = vmatprep.subr.mxu0 0.0
  %611 = vmatpush1.msra.mxu0 0.0
  %612 = vmatprep.subr.mxu0 0.0
  %613 = vmatpush1.msra.mxu0 0.0
  %614 = vmatprep.subr.mxu0 0.0
  %615 = vmatpush1.msra.mxu0 0.0
  %616 = vmatprep.subr.mxu0 0.0
  %617 = vmatpush1.msra.mxu0 0.0
  %618 = vmatprep.subr.mxu0 0.0
  %619 = vmatpush1.msra.mxu0 0.0
  %620 = vmatprep.subr.mxu0 0.0
  %621 = vmatpush1.msra.mxu0 0.0
  %622 = vmatprep.subr.mxu0 0.0
  %623 = vmatpush1.msra.mxu0 %v176
  %624 = vmatprep.subr.mxu0 0.0
  %625 = vmatpush1.msra.mxu0 %v175
  %626 = vmatprep.subr.mxu0 0.0
  %627 = vmatpush1.msra.mxu0 %v174
  %628 = vmatprep.subr.mxu0 0.0
  %629 = vmatpush1.msra.mxu0 %v173
  %630 = vmatprep.subr.mxu0 0.0
  %631 = vmatpush2.msra.mxu0 0.0
  %632 = vmatprep.subr.mxu0 0.0
  %633 = vmatpush2.msra.mxu0 0.0
  %634 = vmatprep.subr.mxu0 0.0
  %635 = vmatpush2.msra.mxu0 0.0
  %636 = vmatprep.subr.mxu0 0.0
  %637 = vmatpush2.msra.mxu0 0.0
  %638 = vmatprep.subr.mxu0 0.0
  %639 = vmatpush2.msra.mxu0 0.0
  %640 = vmatprep.subr.mxu0 0.0
  %641 = vmatpush2.msra.mxu0 0.0
  %642 = vmatprep.subr.mxu0 0.0
  %643 = vmatpush2.msra.mxu0 0.0
  %644 = vmatprep.subr.mxu0 0.0
  %645 = vmatpush2.msra.mxu0 0.0
  %646 = vmatprep.subr.mxu0 0.0
  %647 = vmatpush2.msra.mxu0 0.0
  %648 = vmatprep.subr.mxu0 0.0
  %649 = vmatpush2.msra.mxu0 0.0
  %650 = vmatprep.subr.mxu0 0.0
  %651 = vmatpush2.msra.mxu0 0.0
  %652 = vmatprep.subr.mxu0 0.0
  %653 = vmatpush2.msra.mxu0 0.0
  %654 = vmatprep.subr.mxu0 0.0
  %655 = vmatpush2.msra.mxu0 0.0
  %656 = vmatprep.subr.mxu0 0.0
  %657 = vmatpush2.msra.mxu0 0.0
  %658 = vmatprep.subr.mxu0 0.0
  %659 = vmatpush2.msra.mxu0 0.0
  %660 = vmatprep.subr.mxu0 0.0
  %661 = vmatpush2.msra.mxu0 0.0
  %662 = vmatprep.mubr.f32.mxu0 0.0
  %663 = vmatmul.mubr.f32.gmra.mxu0 %v526
  %v664 = vpop.f32.mrf.mxu0
  %v665 = vadd.f32 0.0, %v664
  %v666 = vpop.f32.mrf.mxu0
  %667 = vdwg.mxu0
  %v668 = vmax.f32 %v665, 1e-20
  %v669 = vrcp.pop %v668
  %v670 = vmul.f32 %v595, %v669
  %v671 = vmax.f32 %v670, 0.0
  %v672 = vld [vmem:[%s0 + $0x90] sm:$0xff]
  %v673 = vld [vmem:[%s0 + $0x98] sm:$0xff]
  %v674 = vld [vmem:[%s0 + $0xa0] sm:$0xff]
  %v675 = vld [vmem:[%s0 + $0xa8] sm:$0xff]
  %v676 = vld [vmem:[%s0 + $0xb0] sm:$0xff]
  %v677 = vld [vmem:[%s0 + $0xb8] sm:$0xff]
  %v678 = vld [vmem:[%s0 + $0xc0] sm:$0xff]
  %v679 = vld [vmem:[%s0 + $0xc8] sm:$0xff]
  %680 = vmatprep.subr.mxu0 0.0
  %681 = vmatpush1.msra.mxu0 0.0
  %682 = vmatprep.subr.mxu0 0.0
  %683 = vmatpush1.msra.mxu0 0.0
  %684 = vmatprep.subr.mxu0 0.0
  %685 = vmatpush1.msra.mxu0 0.0
  %686 = vmatprep.subr.mxu0 0.0
  %687 = vmatpush1.msra.mxu0 0.0
  %688 = vmatprep.subr.mxu0 0.0
  %689 = vmatpush1.msra.mxu0 0.0
  %690 = vmatprep.subr.mxu0 0.0
  %691 = vmatpush1.msra.mxu0 0.0
  %692 = vmatprep.subr.mxu0 0.0
  %693 = vmatpush1.msra.mxu0 0.0
  %694 = vmatprep.subr.mxu0 0.0
  %695 = vmatpush1.msra.mxu0 0.0
  %696 = vmatprep.subr.mxu0 0.0
  %697 = vmatpush1.msra.mxu0 0.0
  %698 = vmatprep.subr.mxu0 0.0
  %699 = vmatpush1.msra.mxu0 0.0
  %700 = vmatprep.subr.mxu0 0.0
  %701 = vmatpush1.msra.mxu0 0.0
  %702 = vmatprep.subr.mxu0 0.0
  %703 = vmatpush1.msra.mxu0 0.0
  %704 = vmatprep.subr.mxu0 0.0
  %705 = vmatpush1.msra.mxu0 %v679
  %706 = vmatprep.subr.mxu0 0.0
  %707 = vmatpush1.msra.mxu0 %v678
  %708 = vmatprep.subr.mxu0 0.0
  %709 = vmatpush1.msra.mxu0 %v677
  %710 = vmatprep.subr.mxu0 0.0
  %711 = vmatpush1.msra.mxu0 %v676
  %712 = vmatprep.subr.mxu0 0.0
  %713 = vmatpush2.msra.mxu0 0.0
  %714 = vmatprep.subr.mxu0 0.0
  %715 = vmatpush2.msra.mxu0 0.0
  %716 = vmatprep.subr.mxu0 0.0
  %717 = vmatpush2.msra.mxu0 0.0
  %718 = vmatprep.subr.mxu0 0.0
  %719 = vmatpush2.msra.mxu0 0.0
  %720 = vmatprep.subr.mxu0 0.0
  %721 = vmatpush2.msra.mxu0 0.0
  %722 = vmatprep.subr.mxu0 0.0
  %723 = vmatpush2.msra.mxu0 0.0
  %724 = vmatprep.subr.mxu0 0.0
  %725 = vmatpush2.msra.mxu0 0.0
  %726 = vmatprep.subr.mxu0 0.0
  %727 = vmatpush2.msra.mxu0 0.0
  %728 = vmatprep.subr.mxu0 0.0
  %729 = vmatpush2.msra.mxu0 0.0
  %730 = vmatprep.subr.mxu0 0.0
  %731 = vmatpush2.msra.mxu0 0.0
  %732 = vmatprep.subr.mxu0 0.0
  %733 = vmatpush2.msra.mxu0 0.0
  %734 = vmatprep.subr.mxu0 0.0
  %735 = vmatpush2.msra.mxu0 0.0
  %736 = vmatprep.subr.mxu0 0.0
  %737 = vmatpush2.msra.mxu0 0.0
  %738 = vmatprep.subr.mxu0 0.0
  %739 = vmatpush2.msra.mxu0 0.0
  %740 = vmatprep.subr.mxu0 0.0
  %741 = vmatpush2.msra.mxu0 0.0
  %742 = vmatprep.subr.mxu0 0.0
  %743 = vmatpush2.msra.mxu0 0.0
  %744 = vmatprep.mubr.f32.mxu0 0.0
  %745 = vmatmul.mubr.f32.gmra.mxu0 %v342
  %v746 = vpop.f32.mrf.mxu0
  %v747 = vadd.f32 0.0, %v746
  %v748 = vpop.f32.mrf.mxu0
  %749 = vdwg.mxu0
  %v750 = vmul.f32 %v747, %v172
  %751 = vmatprep.subr.mxu0 0.0
  %752 = vmatpush1.msra.mxu0 0.0
  %753 = vmatprep.subr.mxu0 0.0
  %754 = vmatpush1.msra.mxu0 0.0
  %755 = vmatprep.subr.mxu0 0.0
  %756 = vmatpush1.msra.mxu0 0.0
  %757 = vmatprep.subr.mxu0 0.0
  %758 = vmatpush1.msra.mxu0 0.0
  %759 = vmatprep.subr.mxu0 0.0
  %760 = vmatpush1.msra.mxu0 0.0
  %761 = vmatprep.subr.mxu0 0.0
  %762 = vmatpush1.msra.mxu0 0.0
  %763 = vmatprep.subr.mxu0 0.0
  %764 = vmatpush1.msra.mxu0 0.0
  %765 = vmatprep.subr.mxu0 0.0
  %766 = vmatpush1.msra.mxu0 0.0
  %767 = vmatprep.subr.mxu0 0.0
  %768 = vmatpush1.msra.mxu0 0.0
  %769 = vmatprep.subr.mxu0 0.0
  %770 = vmatpush1.msra.mxu0 0.0
  %771 = vmatprep.subr.mxu0 0.0
  %772 = vmatpush1.msra.mxu0 0.0
  %773 = vmatprep.subr.mxu0 0.0
  %774 = vmatpush1.msra.mxu0 0.0
  %775 = vmatprep.subr.mxu0 0.0
  %776 = vmatpush1.msra.mxu0 0.0
  %777 = vmatprep.subr.mxu0 0.0
  %778 = vmatpush1.msra.mxu0 0.0
  %779 = vmatprep.subr.mxu0 0.0
  %780 = vmatpush1.msra.mxu0 0.0
  %781 = vmatprep.subr.mxu0 0.0
  %782 = vmatpush1.msra.mxu0 %v750
  %783 = vmatprep.subr.mxu0 0.0
  %784 = vmatpush2.msra.mxu0 0.0
  %785 = vmatprep.subr.mxu0 0.0
  %786 = vmatpush2.msra.mxu0 0.0
  %787 = vmatprep.subr.mxu0 0.0
  %788 = vmatpush2.msra.mxu0 0.0
  %789 = vmatprep.subr.mxu0 0.0
  %790 = vmatpush2.msra.mxu0 0.0
  %791 = vmatprep.subr.mxu0 0.0
  %792 = vmatpush2.msra.mxu0 0.0
  %793 = vmatprep.subr.mxu0 0.0
  %794 = vmatpush2.msra.mxu0 0.0
  %795 = vmatprep.subr.mxu0 0.0
  %796 = vmatpush2.msra.mxu0 0.0
  %797 = vmatprep.subr.mxu0 0.0
  %798 = vmatpush2.msra.mxu0 0.0
  %799 = vmatprep.subr.mxu0 0.0
  %800 = vmatpush2.msra.mxu0 0.0
  %801 = vmatprep.subr.mxu0 0.0
  %802 = vmatpush2.msra.mxu0 0.0
  %803 = vmatprep.subr.mxu0 0.0
  %804 = vmatpush2.msra.mxu0 0.0
  %805 = vmatprep.subr.mxu0 0.0
  %806 = vmatpush2.msra.mxu0 0.0
  %807 = vmatprep.subr.mxu0 0.0
  %808 = vmatpush2.msra.mxu0 0.0
  %809 = vmatprep.subr.mxu0 0.0
  %810 = vmatpush2.msra.mxu0 0.0
  %811 = vmatprep.subr.mxu0 0.0
  %812 = vmatpush2.msra.mxu0 0.0
  %813 = vmatprep.subr.mxu0 0.0
  %814 = vmatpush2.msra.mxu0 0.0
  %815 = vmatprep.mubr.f32.mxu0 0.0
  %816 = vmatmul.mubr.f32.gmra.mxu0 %v265
  %v817 = vpop.f32.mrf.mxu0
  %v818 = vadd.f32 0.0, %v817
  %v819 = vpop.f32.mrf.mxu0
  %820 = vdwg.mxu0
  %v821 = vlaneseq
  %v822 = vshrl.u32 %v821, 7
  %v823 = vsub.s32 0, %v822
  %v824 = vrot.slane %v818, %v823
  %825 = vmatprep.subr.mxu0 0.0
  %826 = vmatpush1.msra.mxu0 0.0
  %827 = vmatprep.subr.mxu0 0.0
  %828 = vmatpush1.msra.mxu0 0.0
  %829 = vmatprep.subr.mxu0 0.0
  %830 = vmatpush1.msra.mxu0 0.0
  %831 = vmatprep.subr.mxu0 0.0
  %832 = vmatpush1.msra.mxu0 0.0
  %833 = vmatprep.subr.mxu0 0.0
  %834 = vmatpush1.msra.mxu0 0.0
  %835 = vmatprep.subr.mxu0 0.0
  %836 = vmatpush1.msra.mxu0 0.0
  %837 = vmatprep.subr.mxu0 0.0
  %838 = vmatpush1.msra.mxu0 0.0
  %839 = vmatprep.subr.mxu0 0.0
  %840 = vmatpush1.msra.mxu0 0.0
  %841 = vmatprep.subr.mxu0 0.0
  %842 = vmatpush1.msra.mxu0 0.0
  %843 = vmatprep.subr.mxu0 0.0
  %844 = vmatpush1.msra.mxu0 0.0
  %845 = vmatprep.subr.mxu0 0.0
  %846 = vmatpush1.msra.mxu0 0.0
  %847 = vmatprep.subr.mxu0 0.0
  %848 = vmatpush1.msra.mxu0 0.0
  %849 = vmatprep.subr.mxu0 0.0
  %850 = vmatpush1.msra.mxu0 %v675
  %851 = vmatprep.subr.mxu0 0.0
  %852 = vmatpush1.msra.mxu0 %v674
  %853 = vmatprep.subr.mxu0 0.0
  %854 = vmatpush1.msra.mxu0 %v673
  %855 = vmatprep.subr.mxu0 0.0
  %856 = vmatpush1.msra.mxu0 %v672
  %857 = vmatprep.subr.mxu0 0.0
  %858 = vmatpush2.msra.mxu0 0.0
  %859 = vmatprep.subr.mxu0 0.0
  %860 = vmatpush2.msra.mxu0 0.0
  %861 = vmatprep.subr.mxu0 0.0
  %862 = vmatpush2.msra.mxu0 0.0
  %863 = vmatprep.subr.mxu0 0.0
  %864 = vmatpush2.msra.mxu0 0.0
  %865 = vmatprep.subr.mxu0 0.0
  %866 = vmatpush2.msra.mxu0 0.0
  %867 = vmatprep.subr.mxu0 0.0
  %868 = vmatpush2.msra.mxu0 0.0
  %869 = vmatprep.subr.mxu0 0.0
  %870 = vmatpush2.msra.mxu0 0.0
  %871 = vmatprep.subr.mxu0 0.0
  %872 = vmatpush2.msra.mxu0 0.0
  %873 = vmatprep.subr.mxu0 0.0
  %874 = vmatpush2.msra.mxu0 0.0
  %875 = vmatprep.subr.mxu0 0.0
  %876 = vmatpush2.msra.mxu0 0.0
  %877 = vmatprep.subr.mxu0 0.0
  %878 = vmatpush2.msra.mxu0 0.0
  %879 = vmatprep.subr.mxu0 0.0
  %880 = vmatpush2.msra.mxu0 0.0
  %881 = vmatprep.subr.mxu0 0.0
  %882 = vmatpush2.msra.mxu0 0.0
  %883 = vmatprep.subr.mxu0 0.0
  %884 = vmatpush2.msra.mxu0 0.0
  %885 = vmatprep.subr.mxu0 0.0
  %886 = vmatpush2.msra.mxu0 0.0
  %887 = vmatprep.subr.mxu0 0.0
  %888 = vmatpush2.msra.mxu0 0.0
  %889 = vmatprep.mubr.f32.mxu0 0.0
  %890 = vmatmul.mubr.f32.gmra.mxu0 %v342
  %v891 = vpop.f32.mrf.mxu0
  %v892 = vadd.f32 %v824, %v891
  %v893 = vpop.f32.mrf.mxu0
  %894 = vdwg.mxu0
  %v895 = vmul.f32 %v892, 0.2
  %v896 = vmax.f32 %v892, %v895
  %v897 = vadd.f32 %v896, %v14
  %v898 = vsel %vm20, %v897, -inf
  %899 = vmax.xlane.f32.xlu0 %v898
  %v900 = vpop.xlane.xlu0 %899
  %v901 = vmax.f32 %v900, -1e+20
  %v902 = vsub.f32 %v897, %v901
  %v903 = vmul.f32 %v902, 1.442695
  %v904 = vpow.pop %v903
  %905 = vmatprep.subr.mxu0 0.0
  %906 = vmatpush1.msra.mxu0 0.0
  %907 = vmatprep.subr.mxu0 0.0
  %908 = vmatpush1.msra.mxu0 0.0
  %909 = vmatprep.subr.mxu0 0.0
  %910 = vmatpush1.msra.mxu0 0.0
  %911 = vmatprep.subr.mxu0 0.0
  %912 = vmatpush1.msra.mxu0 0.0
  %913 = vmatprep.subr.mxu0 0.0
  %914 = vmatpush1.msra.mxu0 0.0
  %915 = vmatprep.subr.mxu0 0.0
  %916 = vmatpush1.msra.mxu0 0.0
  %917 = vmatprep.subr.mxu0 0.0
  %918 = vmatpush1.msra.mxu0 0.0
  %919 = vmatprep.subr.mxu0 0.0
  %920 = vmatpush1.msra.mxu0 0.0
  %921 = vmatprep.subr.mxu0 0.0
  %922 = vmatpush1.msra.mxu0 0.0
  %923 = vmatprep.subr.mxu0 0.0
  %924 = vmatpush1.msra.mxu0 0.0
  %925 = vmatprep.subr.mxu0 0.0
  %926 = vmatpush1.msra.mxu0 0.0
  %927 = vmatprep.subr.mxu0 0.0
  %928 = vmatpush1.msra.mxu0 0.0
  %929 = vmatprep.subr.mxu0 0.0
  %930 = vmatpush1.msra.mxu0 0.0
  %931 = vmatprep.subr.mxu0 0.0
  %932 = vmatpush1.msra.mxu0 0.0
  %933 = vmatprep.subr.mxu0 0.0
  %934 = vmatpush1.msra.mxu0 0.0
  %935 = vmatprep.subr.mxu0 0.0
  %936 = vmatpush1.msra.mxu0 %v169
  %937 = vmatprep.subr.mxu0 0.0
  %938 = vmatpush2.msra.mxu0 0.0
  %939 = vmatprep.subr.mxu0 0.0
  %940 = vmatpush2.msra.mxu0 0.0
  %941 = vmatprep.subr.mxu0 0.0
  %942 = vmatpush2.msra.mxu0 0.0
  %943 = vmatprep.subr.mxu0 0.0
  %944 = vmatpush2.msra.mxu0 0.0
  %945 = vmatprep.subr.mxu0 0.0
  %946 = vmatpush2.msra.mxu0 0.0
  %947 = vmatprep.subr.mxu0 0.0
  %948 = vmatpush2.msra.mxu0 0.0
  %949 = vmatprep.subr.mxu0 0.0
  %950 = vmatpush2.msra.mxu0 0.0
  %951 = vmatprep.subr.mxu0 0.0
  %952 = vmatpush2.msra.mxu0 0.0
  %953 = vmatprep.subr.mxu0 0.0
  %954 = vmatpush2.msra.mxu0 0.0
  %955 = vmatprep.subr.mxu0 0.0
  %956 = vmatpush2.msra.mxu0 0.0
  %957 = vmatprep.subr.mxu0 0.0
  %958 = vmatpush2.msra.mxu0 0.0
  %959 = vmatprep.subr.mxu0 0.0
  %960 = vmatpush2.msra.mxu0 0.0
  %961 = vmatprep.subr.mxu0 0.0
  %962 = vmatpush2.msra.mxu0 0.0
  %963 = vmatprep.subr.mxu0 0.0
  %964 = vmatpush2.msra.mxu0 0.0
  %965 = vmatprep.subr.mxu0 0.0
  %966 = vmatpush2.msra.mxu0 0.0
  %967 = vmatprep.subr.mxu0 0.0
  %968 = vmatpush2.msra.mxu0 0.0
  %969 = vmatprep.mubr.f32.mxu0 0.0
  %970 = vmatmul.mubr.f32.gmra.mxu0 %v425
  %v971 = vpop.f32.mrf.mxu0
  %v972 = vadd.f32 0.0, %v971
  %v973 = vpop.f32.mrf.mxu0
  %974 = vmatprep.mubr.f32.mxu0 0.0
  %975 = vmatmul.mubr.f32.gmra.mxu0 %v428
  %v976 = vpop.f32.mrf.mxu0
  %v977 = vadd.f32 0.0, %v976
  %v978 = vpop.f32.mrf.mxu0
  %979 = vmatprep.mubr.f32.mxu0 0.0
  %980 = vmatmul.mubr.f32.gmra.mxu0 %v431
  %v981 = vpop.f32.mrf.mxu0
  %v982 = vadd.f32 0.0, %v981
  %v983 = vpop.f32.mrf.mxu0
  %984 = vmatprep.mubr.f32.mxu0 0.0
  %985 = vmatmul.mubr.f32.gmra.mxu0 %v434
  %v986 = vpop.f32.mrf.mxu0
  %v987 = vadd.f32 0.0, %v986
  %v988 = vpop.f32.mrf.mxu0
  %989 = vdwg.mxu0
  %v990 = vmul.f32 %v972, %v173
  %v991 = vmul.f32 %v977, %v174
  %v992 = vmul.f32 %v982, %v175
  %v993 = vmul.f32 %v987, %v176
  %v995 = vsel %vm20, %v904, 0
  %997 = vmatprep.subr.mxu0 0.0
  %998 = vmatpush1.msra.mxu0 0.0
  %999 = vmatprep.subr.mxu0 0.0
  %1000 = vmatpush1.msra.mxu0 0.0
  %1001 = vmatprep.subr.mxu0 0.0
  %1002 = vmatpush1.msra.mxu0 0.0
  %1003 = vmatprep.subr.mxu0 0.0
  %1004 = vmatpush1.msra.mxu0 0.0
  %1005 = vmatprep.subr.mxu0 0.0
  %1006 = vmatpush1.msra.mxu0 0.0
  %1007 = vmatprep.subr.mxu0 0.0
  %1008 = vmatpush1.msra.mxu0 0.0
  %1009 = vmatprep.subr.mxu0 0.0
  %1010 = vmatpush1.msra.mxu0 0.0
  %1011 = vmatprep.subr.mxu0 0.0
  %1012 = vmatpush1.msra.mxu0 0.0
  %1013 = vmatprep.subr.mxu0 0.0
  %1014 = vmatpush1.msra.mxu0 0.0
  %1015 = vmatprep.subr.mxu0 0.0
  %1016 = vmatpush1.msra.mxu0 0.0
  %1017 = vmatprep.subr.mxu0 0.0
  %1018 = vmatpush1.msra.mxu0 0.0
  %1019 = vmatprep.subr.mxu0 0.0
  %1020 = vmatpush1.msra.mxu0 0.0
  %1021 = vmatprep.subr.mxu0 0.0
  %1022 = vmatpush1.msra.mxu0 %v993
  %1023 = vmatprep.subr.mxu0 0.0
  %1024 = vmatpush1.msra.mxu0 %v992
  %1025 = vmatprep.subr.mxu0 0.0
  %1026 = vmatpush1.msra.mxu0 %v991
  %1027 = vmatprep.subr.mxu0 0.0
  %1028 = vmatpush1.msra.mxu0 %v990
  %1029 = vmatprep.subr.mxu0 0.0
  %1030 = vmatpush2.msra.mxu0 0.0
  %1031 = vmatprep.subr.mxu0 0.0
  %1032 = vmatpush2.msra.mxu0 0.0
  %1033 = vmatprep.subr.mxu0 0.0
  %1034 = vmatpush2.msra.mxu0 0.0
  %1035 = vmatprep.subr.mxu0 0.0
  %1036 = vmatpush2.msra.mxu0 0.0
  %1037 = vmatprep.subr.mxu0 0.0
  %1038 = vmatpush2.msra.mxu0 0.0
  %1039 = vmatprep.subr.mxu0 0.0
  %1040 = vmatpush2.msra.mxu0 0.0
  %1041 = vmatprep.subr.mxu0 0.0
  %1042 = vmatpush2.msra.mxu0 0.0
  %1043 = vmatprep.subr.mxu0 0.0
  %1044 = vmatpush2.msra.mxu0 0.0
  %1045 = vmatprep.subr.mxu0 0.0
  %1046 = vmatpush2.msra.mxu0 0.0
  %1047 = vmatprep.subr.mxu0 0.0
  %1048 = vmatpush2.msra.mxu0 0.0
  %1049 = vmatprep.subr.mxu0 0.0
  %1050 = vmatpush2.msra.mxu0 0.0
  %1051 = vmatprep.subr.mxu0 0.0
  %1052 = vmatpush2.msra.mxu0 0.0
  %1053 = vmatprep.subr.mxu0 0.0
  %1054 = vmatpush2.msra.mxu0 0.0
  %1055 = vmatprep.subr.mxu0 0.0
  %1056 = vmatpush2.msra.mxu0 0.0
  %1057 = vmatprep.subr.mxu0 0.0
  %1058 = vmatpush2.msra.mxu0 0.0
  %1059 = vmatprep.subr.mxu0 0.0
  %1060 = vmatpush2.msra.mxu0 0.0
  %1061 = vmatprep.mubr.f32.mxu0 0.0
  %1062 = vmatmul.mubr.f32.gmra.mxu0 %v995
  %v1063 = vpop.f32.mrf.mxu0
  %v1064 = vadd.f32 0.0, %v1063
  %v1065 = vpop.f32.mrf.mxu0
  %1066 = vdwg.mxu0
  %1067 = vmatprep.subr.mxu0 0.0
  %1068 = vmatpush1.msra.mxu0 0.0
  %1069 = vmatprep.subr.mxu0 0.0
  %1070 = vmatpush1.msra.mxu0 0.0
  %1071 = vmatprep.subr.mxu0 0.0
  %1072 = vmatpush1.msra.mxu0 0.0
  %1073 = vmatprep.subr.mxu0 0.0
  %1074 = vmatpush1.msra.mxu0 0.0
  %1075 = vmatprep.subr.mxu0 0.0
  %1076 = vmatpush1.msra.mxu0 0.0
  %1077 = vmatprep.subr.mxu0 0.0
  %1078 = vmatpush1.msra.mxu0 0.0
  %1079 = vmatprep.subr.mxu0 0.0
  %1080 = vmatpush1.msra.mxu0 0.0
  %1081 = vmatprep.subr.mxu0 0.0
  %1082 = vmatpush1.msra.mxu0 0.0
  %1083 = vmatprep.subr.mxu0 0.0
  %1084 = vmatpush1.msra.mxu0 0.0
  %1085 = vmatprep.subr.mxu0 0.0
  %1086 = vmatpush1.msra.mxu0 0.0
  %1087 = vmatprep.subr.mxu0 0.0
  %1088 = vmatpush1.msra.mxu0 0.0
  %1089 = vmatprep.subr.mxu0 0.0
  %1090 = vmatpush1.msra.mxu0 0.0
  %1091 = vmatprep.subr.mxu0 0.0
  %1092 = vmatpush1.msra.mxu0 %v176
  %1093 = vmatprep.subr.mxu0 0.0
  %1094 = vmatpush1.msra.mxu0 %v175
  %1095 = vmatprep.subr.mxu0 0.0
  %1096 = vmatpush1.msra.mxu0 %v174
  %1097 = vmatprep.subr.mxu0 0.0
  %1098 = vmatpush1.msra.mxu0 %v173
  %1099 = vmatprep.subr.mxu0 0.0
  %1100 = vmatpush2.msra.mxu0 0.0
  %1101 = vmatprep.subr.mxu0 0.0
  %1102 = vmatpush2.msra.mxu0 0.0
  %1103 = vmatprep.subr.mxu0 0.0
  %1104 = vmatpush2.msra.mxu0 0.0
  %1105 = vmatprep.subr.mxu0 0.0
  %1106 = vmatpush2.msra.mxu0 0.0
  %1107 = vmatprep.subr.mxu0 0.0
  %1108 = vmatpush2.msra.mxu0 0.0
  %1109 = vmatprep.subr.mxu0 0.0
  %1110 = vmatpush2.msra.mxu0 0.0
  %1111 = vmatprep.subr.mxu0 0.0
  %1112 = vmatpush2.msra.mxu0 0.0
  %1113 = vmatprep.subr.mxu0 0.0
  %1114 = vmatpush2.msra.mxu0 0.0
  %1115 = vmatprep.subr.mxu0 0.0
  %1116 = vmatpush2.msra.mxu0 0.0
  %1117 = vmatprep.subr.mxu0 0.0
  %1118 = vmatpush2.msra.mxu0 0.0
  %1119 = vmatprep.subr.mxu0 0.0
  %1120 = vmatpush2.msra.mxu0 0.0
  %1121 = vmatprep.subr.mxu0 0.0
  %1122 = vmatpush2.msra.mxu0 0.0
  %1123 = vmatprep.subr.mxu0 0.0
  %1124 = vmatpush2.msra.mxu0 0.0
  %1125 = vmatprep.subr.mxu0 0.0
  %1126 = vmatpush2.msra.mxu0 0.0
  %1127 = vmatprep.subr.mxu0 0.0
  %1128 = vmatpush2.msra.mxu0 0.0
  %1129 = vmatprep.subr.mxu0 0.0
  %1130 = vmatpush2.msra.mxu0 0.0
  %1131 = vmatprep.mubr.f32.mxu0 0.0
  %1132 = vmatmul.mubr.f32.gmra.mxu0 %v995
  %v1133 = vpop.f32.mrf.mxu0
  %v1134 = vadd.f32 0.0, %v1133
  %v1135 = vpop.f32.mrf.mxu0
  %1136 = vdwg.mxu0
  %v1137 = vmax.f32 %v1134, 1e-20
  %v1138 = vrcp.pop %v1137
  %v1139 = vmul.f32 %v1064, %v1138
  %v1140 = vmax.f32 %v1139, 0.0
  %v1141 = vld [vmem:[%s0 + $0x118] sm:$0xff]
  %v1142 = vld [vmem:[%s0 + $0x120] sm:$0xff]
  %v1143 = vld [vmem:[%s0 + $0x128] sm:$0xff]
  %v1144 = vld [vmem:[%s0 + $0x130] sm:$0xff]
  %v1145 = vld [vmem:[%s0 + $0x138] sm:$0xff]
  %v1146 = vld [vmem:[%s0 + $0x140] sm:$0x1]
  %v1148 = vsel %vm20, %v671, 0
  %1150 = vmatprep.subr.mxu0 0.0
  %1151 = vmatpush1.msra.mxu0 0.0
  %1152 = vmatprep.subr.mxu0 0.0
  %1153 = vmatpush1.msra.mxu0 0.0
  %1154 = vmatprep.subr.mxu0 0.0
  %1155 = vmatpush1.msra.mxu0 0.0
  %1156 = vmatprep.subr.mxu0 0.0
  %1157 = vmatpush1.msra.mxu0 0.0
  %1158 = vmatprep.subr.mxu0 0.0
  %1159 = vmatpush1.msra.mxu0 0.0
  %1160 = vmatprep.subr.mxu0 0.0
  %1161 = vmatpush1.msra.mxu0 0.0
  %1162 = vmatprep.subr.mxu0 0.0
  %1163 = vmatpush1.msra.mxu0 0.0
  %1164 = vmatprep.subr.mxu0 0.0
  %1165 = vmatpush1.msra.mxu0 0.0
  %1166 = vmatprep.subr.mxu0 0.0
  %1167 = vmatpush1.msra.mxu0 0.0
  %1168 = vmatprep.subr.mxu0 0.0
  %1169 = vmatpush1.msra.mxu0 0.0
  %1170 = vmatprep.subr.mxu0 0.0
  %1171 = vmatpush1.msra.mxu0 0.0
  %1172 = vmatprep.subr.mxu0 0.0
  %1173 = vmatpush1.msra.mxu0 0.0
  %1174 = vmatprep.subr.mxu0 0.0
  %1175 = vmatpush1.msra.mxu0 %v1144
  %1176 = vmatprep.subr.mxu0 0.0
  %1177 = vmatpush1.msra.mxu0 %v1143
  %1178 = vmatprep.subr.mxu0 0.0
  %1179 = vmatpush1.msra.mxu0 %v1142
  %1180 = vmatprep.subr.mxu0 0.0
  %1181 = vmatpush1.msra.mxu0 %v1141
  %1182 = vmatprep.subr.mxu0 0.0
  %1183 = vmatpush2.msra.mxu0 0.0
  %1184 = vmatprep.subr.mxu0 0.0
  %1185 = vmatpush2.msra.mxu0 0.0
  %1186 = vmatprep.subr.mxu0 0.0
  %1187 = vmatpush2.msra.mxu0 0.0
  %1188 = vmatprep.subr.mxu0 0.0
  %1189 = vmatpush2.msra.mxu0 0.0
  %1190 = vmatprep.subr.mxu0 0.0
  %1191 = vmatpush2.msra.mxu0 0.0
  %1192 = vmatprep.subr.mxu0 0.0
  %1193 = vmatpush2.msra.mxu0 0.0
  %1194 = vmatprep.subr.mxu0 0.0
  %1195 = vmatpush2.msra.mxu0 0.0
  %1196 = vmatprep.subr.mxu0 0.0
  %1197 = vmatpush2.msra.mxu0 0.0
  %1198 = vmatprep.subr.mxu0 0.0
  %1199 = vmatpush2.msra.mxu0 0.0
  %1200 = vmatprep.subr.mxu0 0.0
  %1201 = vmatpush2.msra.mxu0 0.0
  %1202 = vmatprep.subr.mxu0 0.0
  %1203 = vmatpush2.msra.mxu0 0.0
  %1204 = vmatprep.subr.mxu0 0.0
  %1205 = vmatpush2.msra.mxu0 0.0
  %1206 = vmatprep.subr.mxu0 0.0
  %1207 = vmatpush2.msra.mxu0 0.0
  %1208 = vmatprep.subr.mxu0 0.0
  %1209 = vmatpush2.msra.mxu0 0.0
  %1210 = vmatprep.subr.mxu0 0.0
  %1211 = vmatpush2.msra.mxu0 0.0
  %1212 = vmatprep.subr.mxu0 0.0
  %1213 = vmatpush2.msra.mxu0 0.0
  %1214 = vmatprep.mubr.f32.mxu0 0.0
  %1215 = vmatmul.mubr.f32.gmra.mxu0 %v1148
  %v1216 = vpop.f32.mrf.mxu0
  %v1217 = vadd.f32 %v1145, %v1216
  %v1218 = vpop.f32.mrf.mxu0
  %1219 = vdwg.mxu0
  %v1220 = vtanh.pop %v1217
  %v1222 = vsel %vm20, %v1140, 0
  %1224 = vmatprep.subr.mxu0 0.0
  %1225 = vmatpush1.msra.mxu0 0.0
  %1226 = vmatprep.subr.mxu0 0.0
  %1227 = vmatpush1.msra.mxu0 0.0
  %1228 = vmatprep.subr.mxu0 0.0
  %1229 = vmatpush1.msra.mxu0 0.0
  %1230 = vmatprep.subr.mxu0 0.0
  %1231 = vmatpush1.msra.mxu0 0.0
  %1232 = vmatprep.subr.mxu0 0.0
  %1233 = vmatpush1.msra.mxu0 0.0
  %1234 = vmatprep.subr.mxu0 0.0
  %1235 = vmatpush1.msra.mxu0 0.0
  %1236 = vmatprep.subr.mxu0 0.0
  %1237 = vmatpush1.msra.mxu0 0.0
  %1238 = vmatprep.subr.mxu0 0.0
  %1239 = vmatpush1.msra.mxu0 0.0
  %1240 = vmatprep.subr.mxu0 0.0
  %1241 = vmatpush1.msra.mxu0 0.0
  %1242 = vmatprep.subr.mxu0 0.0
  %1243 = vmatpush1.msra.mxu0 0.0
  %1244 = vmatprep.subr.mxu0 0.0
  %1245 = vmatpush1.msra.mxu0 0.0
  %1246 = vmatprep.subr.mxu0 0.0
  %1247 = vmatpush1.msra.mxu0 0.0
  %1248 = vmatprep.subr.mxu0 0.0
  %1249 = vmatpush1.msra.mxu0 %v1144
  %1250 = vmatprep.subr.mxu0 0.0
  %1251 = vmatpush1.msra.mxu0 %v1143
  %1252 = vmatprep.subr.mxu0 0.0
  %1253 = vmatpush1.msra.mxu0 %v1142
  %1254 = vmatprep.subr.mxu0 0.0
  %1255 = vmatpush1.msra.mxu0 %v1141
  %1256 = vmatprep.subr.mxu0 0.0
  %1257 = vmatpush2.msra.mxu0 0.0
  %1258 = vmatprep.subr.mxu0 0.0
  %1259 = vmatpush2.msra.mxu0 0.0
  %1260 = vmatprep.subr.mxu0 0.0
  %1261 = vmatpush2.msra.mxu0 0.0
  %1262 = vmatprep.subr.mxu0 0.0
  %1263 = vmatpush2.msra.mxu0 0.0
  %1264 = vmatprep.subr.mxu0 0.0
  %1265 = vmatpush2.msra.mxu0 0.0
  %1266 = vmatprep.subr.mxu0 0.0
  %1267 = vmatpush2.msra.mxu0 0.0
  %1268 = vmatprep.subr.mxu0 0.0
  %1269 = vmatpush2.msra.mxu0 0.0
  %1270 = vmatprep.subr.mxu0 0.0
  %1271 = vmatpush2.msra.mxu0 0.0
  %1272 = vmatprep.subr.mxu0 0.0
  %1273 = vmatpush2.msra.mxu0 0.0
  %1274 = vmatprep.subr.mxu0 0.0
  %1275 = vmatpush2.msra.mxu0 0.0
  %1276 = vmatprep.subr.mxu0 0.0
  %1277 = vmatpush2.msra.mxu0 0.0
  %1278 = vmatprep.subr.mxu0 0.0
  %1279 = vmatpush2.msra.mxu0 0.0
  %1280 = vmatprep.subr.mxu0 0.0
  %1281 = vmatpush2.msra.mxu0 0.0
  %1282 = vmatprep.subr.mxu0 0.0
  %1283 = vmatpush2.msra.mxu0 0.0
  %1284 = vmatprep.subr.mxu0 0.0
  %1285 = vmatpush2.msra.mxu0 0.0
  %1286 = vmatprep.subr.mxu0 0.0
  %1287 = vmatpush2.msra.mxu0 0.0
  %1288 = vmatprep.mubr.f32.mxu0 0.0
  %1289 = vmatmul.mubr.f32.gmra.mxu0 %v1222
  %v1290 = vpop.f32.mrf.mxu0
  %v1291 = vadd.f32 %v1145, %v1290
  %v1292 = vpop.f32.mrf.mxu0
  %1293 = vdwg.mxu0
  %v1294 = vtanh.pop %v1291
  %v1295 = vsel %vm20, %v1220, 0.0
  %v1296 = vrot.slane %v1295, 4
  %v1297 = vadd.f32 %v1295, %v1296
  %v1298 = vrot.slane %v1297, 2
  %v1299 = vadd.f32 %v1297, %v1298
  %v1300 = vrot.slane %v1299, 1
  %v1301 = vadd.f32 %v1299, %v1300
  %v1302 = vrcp.pop 8.0
  %v1303 = vmul.f32 %v1301, %v1302
  %v1304 = vmul.f32 %v1146, %v1303
  %vm1305 = vcmask 253952
  %v1306 = vsel %vm1305, %v1304, 0.0
  %1307 = vadd.xlane.f32.xlu0 %v1306
  %v1308 = vpop.xlane.xlu0 %1307
  %v1309 = vsel %vm20, %v1294, 0.0
  %v1310 = vrot.slane %v1309, 4
  %v1311 = vadd.f32 %v1309, %v1310
  %v1312 = vrot.slane %v1311, 2
  %v1313 = vadd.f32 %v1311, %v1312
  %v1314 = vrot.slane %v1313, 1
  %v1315 = vadd.f32 %v1313, %v1314
  %v1316 = vmul.f32 %v1315, %v1302
  %v1317 = vmul.f32 %v1146, %v1316
  %v1318 = vsel %vm1305, %v1317, 0.0
  %1319 = vadd.xlane.f32.xlu0 %v1318
  %v1320 = vpop.xlane.xlu0 %1319
  %v1321 = vmax.f32 %v1308, %v1320
  %v1322 = vsub.f32 %v1308, %v1321
  %v1323 = vmul.f32 %v1322, 1.442695
  %v1324 = vpow.pop %v1323
  %v1325 = vsub.f32 %v1320, %v1321
  %v1326 = vmul.f32 %v1325, 1.442695
  %v1327 = vpow.pop %v1326
  %v1328 = vadd.f32 %v1324, %v1327
  %v1329 = vrcp.pop %v1328
  %v1330 = vmul.f32 %v1324, %v1329
  %v1331 = vlaneseq
  %v1332 = vshrl.u32 %v1331, 7
  %v1333 = vsub.s32 0, %v1332
  %v1334 = vrot.slane %v1330, %v1333
  %v1335 = vmul.f32 %v1334, %v671
  %v1336 = vmul.f32 %v1327, %v1329
  %v1337 = vlaneseq
  %v1338 = vshrl.u32 %v1337, 7
  %v1339 = vsub.s32 0, %v1338
  %v1340 = vrot.slane %v1336, %v1339
  %v1341 = vmul.f32 %v1340, %v1140
  %v1342 = vadd.f32 %v1335, %v1341
  %v1343 = vld [vmem:[%s0 + $0x148] sm:$0xff]
  %v1344 = vld [vmem:[%s0 + $0x150] sm:$0xff]
  %v1345 = vld [vmem:[%s0 + $0x158] sm:$0xff]
  %v1346 = vld [vmem:[%s0 + $0x160] sm:$0xff]
  %v1347 = vld [vmem:[%s0 + $0x168] sm:$0xff]
  %v1349 = vsel %vm20, %v1342, 0
  %1351 = vmatprep.subr.mxu0 0.0
  %1352 = vmatpush1.msra.mxu0 0.0
  %1353 = vmatprep.subr.mxu0 0.0
  %1354 = vmatpush1.msra.mxu0 0.0
  %1355 = vmatprep.subr.mxu0 0.0
  %1356 = vmatpush1.msra.mxu0 0.0
  %1357 = vmatprep.subr.mxu0 0.0
  %1358 = vmatpush1.msra.mxu0 0.0
  %1359 = vmatprep.subr.mxu0 0.0
  %1360 = vmatpush1.msra.mxu0 0.0
  %1361 = vmatprep.subr.mxu0 0.0
  %1362 = vmatpush1.msra.mxu0 0.0
  %1363 = vmatprep.subr.mxu0 0.0
  %1364 = vmatpush1.msra.mxu0 0.0
  %1365 = vmatprep.subr.mxu0 0.0
  %1366 = vmatpush1.msra.mxu0 0.0
  %1367 = vmatprep.subr.mxu0 0.0
  %1368 = vmatpush1.msra.mxu0 0.0
  %1369 = vmatprep.subr.mxu0 0.0
  %1370 = vmatpush1.msra.mxu0 0.0
  %1371 = vmatprep.subr.mxu0 0.0
  %1372 = vmatpush1.msra.mxu0 0.0
  %1373 = vmatprep.subr.mxu0 0.0
  %1374 = vmatpush1.msra.mxu0 0.0
  %1375 = vmatprep.subr.mxu0 0.0
  %1376 = vmatpush1.msra.mxu0 %v1346
  %1377 = vmatprep.subr.mxu0 0.0
  %1378 = vmatpush1.msra.mxu0 %v1345
  %1379 = vmatprep.subr.mxu0 0.0
  %1380 = vmatpush1.msra.mxu0 %v1344
  %1381 = vmatprep.subr.mxu0 0.0
  %1382 = vmatpush1.msra.mxu0 %v1343
  %1383 = vmatprep.subr.mxu0 0.0
  %1384 = vmatpush2.msra.mxu0 0.0
  %1385 = vmatprep.subr.mxu0 0.0
  %1386 = vmatpush2.msra.mxu0 0.0
  %1387 = vmatprep.subr.mxu0 0.0
  %1388 = vmatpush2.msra.mxu0 0.0
  %1389 = vmatprep.subr.mxu0 0.0
  %1390 = vmatpush2.msra.mxu0 0.0
  %1391 = vmatprep.subr.mxu0 0.0
  %1392 = vmatpush2.msra.mxu0 0.0
  %1393 = vmatprep.subr.mxu0 0.0
  %1394 = vmatpush2.msra.mxu0 0.0
  %1395 = vmatprep.subr.mxu0 0.0
  %1396 = vmatpush2.msra.mxu0 0.0
  %1397 = vmatprep.subr.mxu0 0.0
  %1398 = vmatpush2.msra.mxu0 0.0
  %1399 = vmatprep.subr.mxu0 0.0
  %1400 = vmatpush2.msra.mxu0 0.0
  %1401 = vmatprep.subr.mxu0 0.0
  %1402 = vmatpush2.msra.mxu0 0.0
  %1403 = vmatprep.subr.mxu0 0.0
  %1404 = vmatpush2.msra.mxu0 0.0
  %1405 = vmatprep.subr.mxu0 0.0
  %1406 = vmatpush2.msra.mxu0 0.0
  %1407 = vmatprep.subr.mxu0 0.0
  %1408 = vmatpush2.msra.mxu0 0.0
  %1409 = vmatprep.subr.mxu0 0.0
  %1410 = vmatpush2.msra.mxu0 0.0
  %1411 = vmatprep.subr.mxu0 0.0
  %1412 = vmatpush2.msra.mxu0 0.0
  %1413 = vmatprep.subr.mxu0 0.0
  %1414 = vmatpush2.msra.mxu0 0.0
  %1415 = vmatprep.mubr.f32.mxu0 0.0
  %1416 = vmatmul.mubr.f32.gmra.mxu0 %v1349
  %v1417 = vpop.f32.mrf.mxu0
  %v1418 = vadd.f32 %v1347, %v1417
  %v1419 = vpop.f32.mrf.mxu0
  %1420 = vdwg.mxu0
  %vm1421 = vcmask 15360
  %1422 = vst.msk [vmem:[%s2] sm:$0xff] %vm1421, %v1418
  // Predicated region
  $region10: #{han_forward.1} parent=0 // pred_check
    _
  $region11: #{han_forward.1} parent=0 // pred_check_branch
    %1424 = sbr.rel (0) target = $region13
  $region12: #{han_forward.1} parent=0 // pred_region
    _
  $region13: #{han_forward.1} parent=0 // pred_fallthru
    _
  // Predicated region
  $region14: #{han_forward.1} parent=0 // pred_check
    _
  $region15: #{han_forward.1} parent=0 // pred_check_branch
    %1426 = sbr.rel (0) target = $region17
  $region16: #{han_forward.1} parent=0 // pred_region
    _
  $region17: #{han_forward.1} parent=0 // pred_fallthru
    _

</llo_original>
